<compile_context>
chip_gen: v6e
topology: v6e:2x2x1
jax: 0.10.0
libtpu: 0.0.40
codegen_flags: <defaults>
</compile_context>

<pallas_src>
import jax
import jax.numpy as jnp
from jax.experimental import pallas as pl
from jax.experimental.pallas import tpu as pltpu

IN_FEATURES = 32 * 32 * 3   # 3072
HIDDEN = 128
OUT_FEATURES = 10
OUT_PAD = 128               # lane-dense padded fc2 width


def _ann_kernel(x_ref, w1_ref, b1_ref, w2_ref, b2_ref, o_ref):
    # x_ref:  (TILE_B, 3072)   VMEM (streamed per grid step)
    # w1_ref: (3072, 128)      VMEM (resident)
    # b1_ref: (1, 128)         VMEM (resident)
    # w2_ref: (128, 128)       VMEM (resident, zero-padded past column 10)
    # b2_ref: (1, 128)         VMEM (resident, zero-padded past column 10)
    # o_ref:  (TILE_B, 128)    VMEM (lane-dense output slab)
    x = x_ref[...]
    # fc1 + ReLU (MXU matmul, f32 accumulation)
    h = jnp.dot(x, w1_ref[...], preferred_element_type=jnp.float32)
    h = jnp.maximum(h + b1_ref[...], 0.0)
    # fc2 (padded to 128 output lanes; extra columns are exactly zero)
    y = jnp.dot(h, w2_ref[...], preferred_element_type=jnp.float32)
    o_ref[...] = (y + b2_ref[...]).astype(o_ref.dtype)


def _pick_tile_b(batch: int) -> int:
    """Generation-aware batch tile: 2048 on 128-MiB-VMEM parts, 512 on 64-MiB
    parts, clamped to the (8-aligned) batch for small inputs."""
    b_aligned = max(8, ((batch + 7) // 8) * 8)
    try:
        vmem = pltpu.get_tpu_info().vmem_capacity_bytes
        max_tile = 2048 if vmem >= (100 << 20) else 512
    except Exception:
        max_tile = 512  # conservative default (fits v7x's 64 MiB comfortably)
    return min(max_tile, b_aligned)


def ann_forward(x, w1, b1, w2, b2):
    """x: (B, 3, 32, 32) float32 (NCHW). Returns (B, 10) float32."""
    B = x.shape[0]
    # Same row-major flatten as torch's .view(-1, 3072).
    x_flat = x.reshape(B, IN_FEATURES)

    tile_b = _pick_tile_b(B)
    b_pad = ((B + tile_b - 1) // tile_b) * tile_b
    if b_pad != B:
        x_flat = jnp.pad(x_flat, ((0, b_pad - B), (0, 0)))

    # Lane-dense padding of fc2: (128, 10) -> (128, 128), (1, 10) -> (1, 128).
    w2_p = jnp.zeros((HIDDEN, OUT_PAD), w2.dtype).at[:, :OUT_FEATURES].set(w2)
    b2_p = jnp.zeros((1, OUT_PAD), b2.dtype).at[:, :OUT_FEATURES].set(b2)

    num_tiles = b_pad // tile_b

    # VMEM budget: double-buffered x tile + double-buffered output tile
    # + resident weights (assume x2) + compiler scratch margin.
    weight_bytes = (IN_FEATURES * HIDDEN + HIDDEN + HIDDEN * OUT_PAD + OUT_PAD) * 4
    vmem_limit = max(
        32 << 20,
        int(2 * tile_b * IN_FEATURES * 4
            + 2 * tile_b * OUT_PAD * 4
            + 2 * weight_bytes
            + (16 << 20)),
    )

    flops = 2 * b_pad * IN_FEATURES * HIDDEN + 2 * b_pad * HIDDEN * OUT_PAD
    bytes_accessed = (b_pad * IN_FEATURES          # x read
                      + IN_FEATURES * HIDDEN + HIDDEN       # fc1 params
                      + HIDDEN * OUT_PAD + OUT_PAD          # fc2 params (padded)
                      + b_pad * OUT_PAD) * 4                # output write

    out = pl.pallas_call(
        _ann_kernel,
        out_shape=jax.ShapeDtypeStruct((b_pad, OUT_PAD), jnp.float32),
        grid=(num_tiles,),
        in_specs=[
            pl.BlockSpec((tile_b, IN_FEATURES), lambda i: (i, 0)),      # x: streamed
            pl.BlockSpec((IN_FEATURES, HIDDEN), lambda i: (0, 0)),      # w1: resident
            pl.BlockSpec((1, HIDDEN), lambda i: (0, 0)),                # b1: resident
            pl.BlockSpec((HIDDEN, OUT_PAD), lambda i: (0, 0)),          # w2: resident
            pl.BlockSpec((1, OUT_PAD), lambda i: (0, 0)),               # b2: resident
        ],
        out_specs=pl.BlockSpec((tile_b, OUT_PAD), lambda i: (i, 0)),
        compiler_params=pltpu.CompilerParams(
            dimension_semantics=("parallel",),
            vmem_limit_bytes=vmem_limit,
        ),
        cost_estimate=pl.CostEstimate(
            flops=flops, transcendentals=0, bytes_accessed=bytes_accessed),
    )(x_flat, w1, b1, w2_p, b2_p)

    # Drop batch padding and the zero-padded fc2 columns.
    return out[:B, :OUT_FEATURES]


def init_params(key):
    """Deterministic parameter init mirroring nn.Linear shapes.

    Stored as (in_features, out_features) for direct x @ W use in the kernel.
    """
    k1, k2, k3, k4 = jax.random.split(key, 4)
    bound1 = 1.0 / jnp.sqrt(IN_FEATURES)
    bound2 = 1.0 / jnp.sqrt(HIDDEN)
    w1 = jax.random.uniform(k1, (IN_FEATURES, HIDDEN), jnp.float32,
                            minval=-bound1, maxval=bound1)
    b1 = jax.random.uniform(k2, (1, HIDDEN), jnp.float32,
                            minval=-bound1, maxval=bound1)
    w2 = jax.random.uniform(k3, (HIDDEN, OUT_FEATURES), jnp.float32,
                            minval=-bound2, maxval=bound2)
    b2 = jax.random.uniform(k4, (1, OUT_FEATURES), jnp.float32,
                            minval=-bound2, maxval=bound2)
    return w1, b1, w2, b2


if __name__ == "__main__":
    key = jax.random.PRNGKey(0)
    kx, kp = jax.random.split(key)

    B = 2
    x = jax.random.normal(kx, (B, 3, 32, 32), jnp.float32)  # NCHW like PyTorch
    w1, b1, w2, b2 = init_params(kp)

    out = ann_forward(x, w1, b1, w2, b2)
    jax.block_until_ready(out)

    # Reference check in plain JAX (same math, f32 everywhere).
    ref = jnp.maximum(x.reshape(B, -1) @ w1 + b1, 0.0) @ w2 + b2
    assert out.shape == (B, OUT_FEATURES)
    assert jnp.allclose(out, ref, atol=1e-4, rtol=1e-4)

    print("KERNEL_OK")
</pallas_src>

<mosaic_0001>
module attributes {stable_mosaic.version = 11 : i64} {
  func.func @_ann_kernel(%arg0: i32, %arg1: memref<8x3072xf32, #tpu.memory_space<vmem>>, %arg2: memref<3072x128xf32, #tpu.memory_space<vmem>>, %arg3: memref<1x128xf32, #tpu.memory_space<vmem>>, %arg4: memref<128x128xf32, #tpu.memory_space<vmem>>, %arg5: memref<1x128xf32, #tpu.memory_space<vmem>>, %arg6: memref<8x128xf32, #tpu.memory_space<vmem>>) attributes {dimension_semantics = [#tpu.dimension_semantics<parallel>], iteration_bounds = array<i64: 1>, scalar_prefetch = 0 : i64, scratch_operands = 0 : i64, tpu.core_type = #tpu.core_type<tc>, window_params = [{transform_indices = @transform_0, window_bounds = array<i64: 8, 3072>}, {pipeline_mode = #tpu.pipeline_mode<synchronous>, transform_indices = @transform_1, window_bounds = array<i64: 3072, 128>}, {pipeline_mode = #tpu.pipeline_mode<synchronous>, transform_indices = @transform_2, window_bounds = array<i64: 1, 128>}, {pipeline_mode = #tpu.pipeline_mode<synchronous>, transform_indices = @transform_3, window_bounds = array<i64: 128, 128>}, {pipeline_mode = #tpu.pipeline_mode<synchronous>, transform_indices = @transform_4, window_bounds = array<i64: 1, 128>}, {transform_indices = @transform_5, window_bounds = array<i64: 8, 128>}]} {
    %c0 = arith.constant 0 : index
    %c0_0 = arith.constant 0 : index
    %0 = vector.load %arg1[%c0, %c0_0] : memref<8x3072xf32, #tpu.memory_space<vmem>>, vector<8x3072xf32>
    %c0_1 = arith.constant 0 : index
    %c0_2 = arith.constant 0 : index
    %1 = vector.load %arg2[%c0_1, %c0_2] : memref<3072x128xf32, #tpu.memory_space<vmem>>, vector<3072x128xf32>
    %cst = arith.constant dense<0.000000e+00> : vector<8x128xf32>
    %2 = tpu.matmul %0, %1, %cst {dimension_numbers = #tpu.dot_dimension_numbers<[1], [0], [0], [1], [0, 0, 1, 1], [], []>} : vector<8x3072xf32>, vector<3072x128xf32>, vector<8x128xf32> -> vector<8x128xf32>
    %c0_3 = arith.constant 0 : index
    %c0_4 = arith.constant 0 : index
    %3 = vector.load %arg3[%c0_3, %c0_4] : memref<1x128xf32, #tpu.memory_space<vmem>>, vector<1x128xf32>
    %4 = vector.broadcast %3 : vector<1x128xf32> to vector<8x128xf32>
    %5 = arith.addf %2, %4 : vector<8x128xf32>
    %cst_5 = arith.constant 0.000000e+00 : f32
    %6 = vector.broadcast %cst_5 : f32 to vector<8x128xf32>
    %7 = arith.maximumf %5, %6 : vector<8x128xf32>
    %c0_6 = arith.constant 0 : index
    %c0_7 = arith.constant 0 : index
    %8 = vector.load %arg4[%c0_6, %c0_7] : memref<128x128xf32, #tpu.memory_space<vmem>>, vector<128x128xf32>
    %cst_8 = arith.constant dense<0.000000e+00> : vector<8x128xf32>
    %9 = tpu.matmul %7, %8, %cst_8 {dimension_numbers = #tpu.dot_dimension_numbers<[1], [0], [0], [1], [0, 0, 1, 1], [], []>} : vector<8x128xf32>, vector<128x128xf32>, vector<8x128xf32> -> vector<8x128xf32>
    %c0_9 = arith.constant 0 : index
    %c0_10 = arith.constant 0 : index
    %10 = vector.load %arg5[%c0_9, %c0_10] : memref<1x128xf32, #tpu.memory_space<vmem>>, vector<1x128xf32>
    %11 = vector.broadcast %10 : vector<1x128xf32> to vector<8x128xf32>
    %12 = arith.addf %9, %11 : vector<8x128xf32>
    %c0_11 = arith.constant 0 : index
    %c0_12 = arith.constant 0 : index
    %13 = vector.load %arg6[%c0_11, %c0_12] : memref<8x128xf32, #tpu.memory_space<vmem>>, vector<8x128xf32>
    tpu.vector_store %arg6[%c0_11, %c0_12], %12 {strides = array<i32>} : memref<8x128xf32, #tpu.memory_space<vmem>>, vector<8x128xf32>,
    return
  }
  func.func @transform_0(%arg0: i32) -> (i32, i32) {
    %c0_i32 = arith.constant 0 : i32
    %c0_i32_0 = arith.constant 0 : i32
    return %arg0, %c0_i32 : i32, i32
  }
  func.func @transform_1(%arg0: i32) -> (i32, i32) {
    %c0_i32 = arith.constant 0 : i32
    %c0_i32_0 = arith.constant 0 : i32
    %c0_i32_1 = arith.constant 0 : i32
    return %c0_i32, %c0_i32_0 : i32, i32
  }
  func.func @transform_2(%arg0: i32) -> (i32, i32) {
    %c0_i32 = arith.constant 0 : i32
    %c0_i32_0 = arith.constant 0 : i32
    %c0_i32_1 = arith.constant 0 : i32
    return %c0_i32, %c0_i32_0 : i32, i32
  }
  func.func @transform_3(%arg0: i32) -> (i32, i32) {
    %c0_i32 = arith.constant 0 : i32
    %c0_i32_0 = arith.constant 0 : i32
    %c0_i32_1 = arith.constant 0 : i32
    return %c0_i32, %c0_i32_0 : i32, i32
  }
  func.func @transform_4(%arg0: i32) -> (i32, i32) {
    %c0_i32 = arith.constant 0 : i32
    %c0_i32_0 = arith.constant 0 : i32
    %c0_i32_1 = arith.constant 0 : i32
    return %c0_i32, %c0_i32_0 : i32, i32
  }
  func.func @transform_5(%arg0: i32) -> (i32, i32) {
    %c0_i32 = arith.constant 0 : i32
    %c0_i32_0 = arith.constant 0 : i32
    return %arg0, %c0_i32 : i32, i32
  }
}

</mosaic_0001>

<llo_original>
// kernel: tpu_custom_call.1
$region0: #{tpu_custom_call.1}
  #allocation0 [shape = 'u32[]', space=smem, size = 0x4, offset = 0x4, fixed_abs, tag = 'smem constant byte address 0x4 - core index']
  #allocation1 [shape = 'u32[144,128]{1,0:T(1,128)}', space=vmem, size = 0x12000, scoped, tag = 'internal scratch']
  %s0 = inlined_call_operand.hbm [shape: f32[8,3072], index: 0, kind: input, shape index: {}]
  %s1 = inlined_call_operand.hbm [shape: f32[3072,128], index: 1, kind: input, shape index: {}]
  %s2 = inlined_call_operand.hbm [shape: f32[1,128], index: 2, kind: input, shape index: {}]
  %s3 = inlined_call_operand.hbm [shape: f32[128,128], index: 3, kind: input, shape index: {}]
  %s4 = inlined_call_operand.hbm [shape: f32[1,128], index: 4, kind: input, shape index: {}]
  %s5 = inlined_call_operand.hbm [shape: f32[8,128], index: 5, kind: output, shape index: {}]
  %s6 = sld [smem:[#allocation0]]
  $region50: #{tpu_custom_call.1} parent=0
    _
  %s8 = ssub.s32 1, %s6
  %s9 = scalar_select 0, %s8, %s6
  $region1: #{tpu_custom_call.1} parent=0
    #allocation2 [shape = 'u8[98304]{0}', space=vmem, size = 0x18000, scoped, tag = 'input window, operand 0, single buffered']
    #allocation3 [shape = 's32[1]{0}', space=sflag, size = 0x4, scoped, tag = 'scoped memory for tpu_custom_call.1']
    #allocation4 [shape = 's32[1]{0}', space=sflag, size = 0x4, scoped, tag = 'scoped memory for tpu_custom_call.1']
    #allocation5 [shape = 'u8[1572864]{0}', space=vmem, size = 0x180000, scoped, tag = 'input window, operand 1, single buffered']
    #allocation6 [shape = 's32[1]{0}', space=sflag, size = 0x4, scoped, tag = 'scoped memory for tpu_custom_call.1']
    #allocation7 [shape = 'u8[512]{0}', space=vmem, size = 0x400, scoped, tag = 'input window, operand 2, single buffered']
    #allocation8 [shape = 'u8[65536]{0}', space=vmem, size = 0x10000, scoped, tag = 'input window, operand 3, single buffered']
    #allocation9 [shape = 's32[1]{0}', space=sflag, size = 0x4, scoped, tag = 'scoped memory for tpu_custom_call.1']
    #allocation10 [shape = 'u8[512]{0}', space=vmem, size = 0x400, scoped, tag = 'input window, operand 4, single buffered']
    #allocation11 [shape = 'u8[4096]{0}', space=vmem, size = 0x1000, scoped, tag = 'output window, operand 0, single buffered']
    %10 = vsyncpa [#allocation3], 0
    %11 = vsyncpa [#allocation6], 0
    %12 = vsyncpa [#allocation9], 0
    %13 = vsyncpa [#allocation4], 0
    // Predicated region
    $region2: #{tpu_custom_call.1} parent=1 // pred_check
      _
    $region3: #{tpu_custom_call.1} parent=1 // pred_check_branch
      %15 = sbr.rel (0) target = $region5
    $region4: #{tpu_custom_call.1} parent=1 // pred_region
      %s17 = ssub.s32 3072, 3072
      %18 = vsyncadd [#allocation3], %s17
      %s20 = sshll.u32 [#allocation2], 4
      %s21 = int_to_ptr.vmem [resolvable:$true] %s20
      %23 = dma.hbm_to_vmem [thread:$0]  %s0, 3072, %s21, [#allocation3]
    $region5: #{tpu_custom_call.1} parent=1 // pred_fallthru
      _
    // Predicated region
    $region6: #{tpu_custom_call.1} parent=1 // pred_check
      _
    $region7: #{tpu_custom_call.1} parent=1 // pred_check_branch
      %25 = sbr.rel (0) target = $region9
    $region8: #{tpu_custom_call.1} parent=1 // pred_region
      %s27 = ssub.s32 49152, 49152
      %28 = vsyncadd [#allocation6], %s27
      %s29 = sshll.u32 [#allocation5], 4
      %s30 = int_to_ptr.vmem [resolvable:$true] %s29
      %35 = dma.hbm_to_vmem [thread:$0]  %s1, 49152, %s30, [#allocation6], 128, 128, 8
    $region9: #{tpu_custom_call.1} parent=1 // pred_fallthru
      _
    // Predicated region
    $region10: #{tpu_custom_call.1} parent=1 // pred_check
      _
    $region11: #{tpu_custom_call.1} parent=1 // pred_check_branch
      %37 = sbr.rel (0) target = $region13
    $region12: #{tpu_custom_call.1} parent=1 // pred_region
      %s39 = ssub.s32 16, 16
      %40 = vsyncadd [#allocation6], %s39
      %s42 = sshll.u32 [#allocation7], 4
      %s43 = int_to_ptr.vmem [resolvable:$true] %s42
      %45 = dma.hbm_to_vmem [thread:$0]  %s2, 16, %s43, [#allocation6]
    $region13: #{tpu_custom_call.1} parent=1 // pred_fallthru
      _
    // Predicated region
    $region14: #{tpu_custom_call.1} parent=1 // pred_check
      _
    $region15: #{tpu_custom_call.1} parent=1 // pred_check_branch
      %47 = sbr.rel (0) target = $region17
    $region16: #{tpu_custom_call.1} parent=1 // pred_region
      %s49 = ssub.s32 2048, 2048
      %50 = vsyncadd [#allocation9], %s49
      %s51 = sshll.u32 [#allocation8], 4
      %s52 = int_to_ptr.vmem [resolvable:$true] %s51
      %57 = dma.hbm_to_vmem [thread:$0]  %s3, 2048, %s52, [#allocation9], 128, 128, 8
    $region17: #{tpu_custom_call.1} parent=1 // pred_fallthru
      _
    // Predicated region
    $region18: #{tpu_custom_call.1} parent=1 // pred_check
      _
    $region19: #{tpu_custom_call.1} parent=1 // pred_check_branch
      %59 = sbr.rel (0) target = $region21
    $region20: #{tpu_custom_call.1} parent=1 // pred_region
      %s61 = ssub.s32 16, 16
      %62 = vsyncadd [#allocation9], %s61
      %s64 = sshll.u32 [#allocation10], 4
      %s65 = int_to_ptr.vmem [resolvable:$true] %s64
      %67 = dma.hbm_to_vmem [thread:$0]  %s4, 16, %s65, [#allocation9]
    $region21: #{tpu_custom_call.1} parent=1 // pred_fallthru
      _
    // Predicated region
    $region22: #{tpu_custom_call.1} parent=1 // pred_check
      _
    $region23: #{tpu_custom_call.1} parent=1 // pred_check_branch
      %69 = sbr.rel (0) target = $region25
    $region24: #{tpu_custom_call.1} parent=1 // pred_region
      %70 = dma.done [#allocation3], 3072
    $region25: #{tpu_custom_call.1} parent=1 // pred_fallthru
      _
    // Predicated region
    $region26: #{tpu_custom_call.1} parent=1 // pred_check
      _
    $region27: #{tpu_custom_call.1} parent=1 // pred_check_branch
      %72 = sbr.rel (0) target = $region29
    $region28: #{tpu_custom_call.1} parent=1 // pred_region
      %73 = dma.done [#allocation6], 49152
    $region29: #{tpu_custom_call.1} parent=1 // pred_fallthru
      _
    // Predicated region
    $region30: #{tpu_custom_call.1} parent=1 // pred_check
      _
    $region31: #{tpu_custom_call.1} parent=1 // pred_check_branch
      %75 = sbr.rel (0) target = $region33
    $region32: #{tpu_custom_call.1} parent=1 // pred_region
      %76 = dma.done [#allocation6], 16
    $region33: #{tpu_custom_call.1} parent=1 // pred_fallthru
      _
    // Predicated region
    $region34: #{tpu_custom_call.1} parent=1 // pred_check
      _
    $region35: #{tpu_custom_call.1} parent=1 // pred_check_branch
      %78 = sbr.rel (0) target = $region37
    $region36: #{tpu_custom_call.1} parent=1 // pred_region
      %79 = dma.done [#allocation9], 2048
    $region37: #{tpu_custom_call.1} parent=1 // pred_fallthru
      _
    // Predicated region
    $region38: #{tpu_custom_call.1} parent=1 // pred_check
      _
    $region39: #{tpu_custom_call.1} parent=1 // pred_check_branch
      %81 = sbr.rel (0) target = $region41
    $region40: #{tpu_custom_call.1} parent=1 // pred_region
      %82 = dma.done [#allocation9], 16
    $region41: #{tpu_custom_call.1} parent=1 // pred_fallthru
      _
    %v83 = vld [vmem:[#allocation2] sm:$0xff]
    %v84 = vld [vmem:[#allocation2 + $0x8] sm:$0xff]
    %v85 = vld [vmem:[#allocation2 + $0x10] sm:$0xff]
    %v86 = vld [vmem:[#allocation2 + $0x18] sm:$0xff]
    %v87 = vld [vmem:[#allocation2 + $0x20] sm:$0xff]
    %v88 = vld [vmem:[#allocation2 + $0x28] sm:$0xff]
    %v89 = vld [vmem:[#allocation2 + $0x30] sm:$0xff]
    %v90 = vld [vmem:[#allocation2 + $0x38] sm:$0xff]
    %v91 = vld [vmem:[#allocation2 + $0x40] sm:$0xff]
    %v92 = vld [vmem:[#allocation2 + $0x48] sm:$0xff]
    %v93 = vld [vmem:[#allocation2 + $0x50] sm:$0xff]
    %v94 = vld [vmem:[#allocation2 + $0x58] sm:$0xff]
    %v95 = vld [vmem:[#allocation2 + $0x60] sm:$0xff]
    %v96 = vld [vmem:[#allocation2 + $0x68] sm:$0xff]
    %v97 = vld [vmem:[#allocation2 + $0x70] sm:$0xff]
    %v98 = vld [vmem:[#allocation2 + $0x78] sm:$0xff]
    %v99 = vld [vmem:[#allocation2 + $0x80] sm:$0xff]
    %v100 = vld [vmem:[#allocation2 + $0x88] sm:$0xff]
    %v101 = vld [vmem:[#allocation2 + $0x90] sm:$0xff]
    %v102 = vld [vmem:[#allocation2 + $0x98] sm:$0xff]
    %v103 = vld [vmem:[#allocation2 + $0xa0] sm:$0xff]
    %v104 = vld [vmem:[#allocation2 + $0xa8] sm:$0xff]
    %v105 = vld [vmem:[#allocation2 + $0xb0] sm:$0xff]
    %v106 = vld [vmem:[#allocation2 + $0xb8] sm:$0xff]
    %v107 = vld [vmem:[#allocation5] sm:$0xff]
    %v108 = vld [vmem:[#allocation5 + $0x8] sm:$0xff]
    %v109 = vld [vmem:[#allocation5 + $0x10] sm:$0xff]
    %v110 = vld [vmem:[#allocation5 + $0x18] sm:$0xff]
    %v111 = vld [vmem:[#allocation5 + $0x20] sm:$0xff]
    %v112 = vld [vmem:[#allocation5 + $0x28] sm:$0xff]
    %v113 = vld [vmem:[#allocation5 + $0x30] sm:$0xff]
    %v114 = vld [vmem:[#allocation5 + $0x38] sm:$0xff]
    %v115 = vld [vmem:[#allocation5 + $0x40] sm:$0xff]
    %v116 = vld [vmem:[#allocation5 + $0x48] sm:$0xff]
    %v117 = vld [vmem:[#allocation5 + $0x50] sm:$0xff]
    %v118 = vld [vmem:[#allocation5 + $0x58] sm:$0xff]
    %v119 = vld [vmem:[#allocation5 + $0x60] sm:$0xff]
    %v120 = vld [vmem:[#allocation5 + $0x68] sm:$0xff]
    %v121 = vld [vmem:[#allocation5 + $0x70] sm:$0xff]
    %v122 = vld [vmem:[#allocation5 + $0x78] sm:$0xff]
    %v123 = vld [vmem:[#allocation5 + $0x80] sm:$0xff]
    %v124 = vld [vmem:[#allocation5 + $0x88] sm:$0xff]
    %v125 = vld [vmem:[#allocation5 + $0x90] sm:$0xff]
    %v126 = vld [vmem:[#allocation5 + $0x98] sm:$0xff]
    %v127 = vld [vmem:[#allocation5 + $0xa0] sm:$0xff]
    %v128 = vld [vmem:[#allocation5 + $0xa8] sm:$0xff]
    %v129 = vld [vmem:[#allocation5 + $0xb0] sm:$0xff]
    %v130 = vld [vmem:[#allocation5 + $0xb8] sm:$0xff]
    %v131 = vld [vmem:[#allocation5 + $0xc0] sm:$0xff]
    %v132 = vld [vmem:[#allocation5 + $0xc8] sm:$0xff]
    %v133 = vld [vmem:[#allocation5 + $0xd0] sm:$0xff]
    %v134 = vld [vmem:[#allocation5 + $0xd8] sm:$0xff]
    %v135 = vld [vmem:[#allocation5 + $0xe0] sm:$0xff]
    %v136 = vld [vmem:[#allocation5 + $0xe8] sm:$0xff]
    %v137 = vld [vmem:[#allocation5 + $0xf0] sm:$0xff]
    %v138 = vld [vmem:[#allocation5 + $0xf8] sm:$0xff]
    %v139 = vld [vmem:[#allocation5 + $0x100] sm:$0xff]
    %v140 = vld [vmem:[#allocation5 + $0x108] sm:$0xff]
    %v141 = vld [vmem:[#allocation5 + $0x110] sm:$0xff]
    %v142 = vld [vmem:[#allocation5 + $0x118] sm:$0xff]
    %v143 = vld [vmem:[#allocation5 + $0x120] sm:$0xff]
    %v144 = vld [vmem:[#allocation5 + $0x128] sm:$0xff]
    %v145 = vld [vmem:[#allocation5 + $0x130] sm:$0xff]
    %v146 = vld [vmem:[#allocation5 + $0x138] sm:$0xff]
    %v147 = vld [vmem:[#allocation5 + $0x140] sm:$0xff]
    %v148 = vld [vmem:[#allocation5 + $0x148] sm:$0xff]
    %v149 = vld [vmem:[#allocation5 + $0x150] sm:$0xff]
    %v150 = vld [vmem:[#allocation5 + $0x158] sm:$0xff]
    %v151 = vld [vmem:[#allocation5 + $0x160] sm:$0xff]
    %v152 = vld [vmem:[#allocation5 + $0x168] sm:$0xff]
    %v153 = vld [vmem:[#allocation5 + $0x170] sm:$0xff]
    %v154 = vld [vmem:[#allocation5 + $0x178] sm:$0xff]
    %v155 = vld [vmem:[#allocation5 + $0x180] sm:$0xff]
    %v156 = vld [vmem:[#allocation5 + $0x188] sm:$0xff]
    %v157 = vld [vmem:[#allocation5 + $0x190] sm:$0xff]
    %v158 = vld [vmem:[#allocation5 + $0x198] sm:$0xff]
    %v159 = vld [vmem:[#allocation5 + $0x1a0] sm:$0xff]
    %v160 = vld [vmem:[#allocation5 + $0x1a8] sm:$0xff]
    %v161 = vld [vmem:[#allocation5 + $0x1b0] sm:$0xff]
    %v162 = vld [vmem:[#allocation5 + $0x1b8] sm:$0xff]
    %v163 = vld [vmem:[#allocation5 + $0x1c0] sm:$0xff]
    %v164 = vld [vmem:[#allocation5 + $0x1c8] sm:$0xff]
    %v165 = vld [vmem:[#allocation5 + $0x1d0] sm:$0xff]
    %v166 = vld [vmem:[#allocation5 + $0x1d8] sm:$0xff]
    %v167 = vld [vmem:[#allocation5 + $0x1e0] sm:$0xff]
    %v168 = vld [vmem:[#allocation5 + $0x1e8] sm:$0xff]
    %v169 = vld [vmem:[#allocation5 + $0x1f0] sm:$0xff]
    %v170 = vld [vmem:[#allocation5 + $0x1f8] sm:$0xff]
    %v171 = vld [vmem:[#allocation5 + $0x200] sm:$0xff]
    %v172 = vld [vmem:[#allocation5 + $0x208] sm:$0xff]
    %v173 = vld [vmem:[#allocation5 + $0x210] sm:$0xff]
    %v174 = vld [vmem:[#allocation5 + $0x218] sm:$0xff]
    %v175 = vld [vmem:[#allocation5 + $0x220] sm:$0xff]
    %v176 = vld [vmem:[#allocation5 + $0x228] sm:$0xff]
    %v177 = vld [vmem:[#allocation5 + $0x230] sm:$0xff]
    %v178 = vld [vmem:[#allocation5 + $0x238] sm:$0xff]
    %v179 = vld [vmem:[#allocation5 + $0x240] sm:$0xff]
    %v180 = vld [vmem:[#allocation5 + $0x248] sm:$0xff]
    %v181 = vld [vmem:[#allocation5 + $0x250] sm:$0xff]
    %v182 = vld [vmem:[#allocation5 + $0x258] sm:$0xff]
    %v183 = vld [vmem:[#allocation5 + $0x260] sm:$0xff]
    %v184 = vld [vmem:[#allocation5 + $0x268] sm:$0xff]
    %v185 = vld [vmem:[#allocation5 + $0x270] sm:$0xff]
    %v186 = vld [vmem:[#allocation5 + $0x278] sm:$0xff]
    %v187 = vld [vmem:[#allocation5 + $0x280] sm:$0xff]
    %v188 = vld [vmem:[#allocation5 + $0x288] sm:$0xff]
    %v189 = vld [vmem:[#allocation5 + $0x290] sm:$0xff]
    %v190 = vld [vmem:[#allocation5 + $0x298] sm:$0xff]
    %v191 = vld [vmem:[#allocation5 + $0x2a0] sm:$0xff]
    %v192 = vld [vmem:[#allocation5 + $0x2a8] sm:$0xff]
    %v193 = vld [vmem:[#allocation5 + $0x2b0] sm:$0xff]
    %v194 = vld [vmem:[#allocation5 + $0x2b8] sm:$0xff]
    %v195 = vld [vmem:[#allocation5 + $0x2c0] sm:$0xff]
    %v196 = vld [vmem:[#allocation5 + $0x2c8] sm:$0xff]
    %v197 = vld [vmem:[#allocation5 + $0x2d0] sm:$0xff]
    %v198 = vld [vmem:[#allocation5 + $0x2d8] sm:$0xff]
    %v199 = vld [vmem:[#allocation5 + $0x2e0] sm:$0xff]
    %v200 = vld [vmem:[#allocation5 + $0x2e8] sm:$0xff]
    %v201 = vld [vmem:[#allocation5 + $0x2f0] sm:$0xff]
    %v202 = vld [vmem:[#allocation5 + $0x2f8] sm:$0xff]
    %v203 = vld [vmem:[#allocation5 + $0x300] sm:$0xff]
    %v204 = vld [vmem:[#allocation5 + $0x308] sm:$0xff]
    %v205 = vld [vmem:[#allocation5 + $0x310] sm:$0xff]
    %v206 = vld [vmem:[#allocation5 + $0x318] sm:$0xff]
    %v207 = vld [vmem:[#allocation5 + $0x320] sm:$0xff]
    %v208 = vld [vmem:[#allocation5 + $0x328] sm:$0xff]
    %v209 = vld [vmem:[#allocation5 + $0x330] sm:$0xff]
    %v210 = vld [vmem:[#allocation5 + $0x338] sm:$0xff]
    %v211 = vld [vmem:[#allocation5 + $0x340] sm:$0xff]
    %v212 = vld [vmem:[#allocation5 + $0x348] sm:$0xff]
    %v213 = vld [vmem:[#allocation5 + $0x350] sm:$0xff]
    %v214 = vld [vmem:[#allocation5 + $0x358] sm:$0xff]
    %v215 = vld [vmem:[#allocation5 + $0x360] sm:$0xff]
    %v216 = vld [vmem:[#allocation5 + $0x368] sm:$0xff]
    %v217 = vld [vmem:[#allocation5 + $0x370] sm:$0xff]
    %v218 = vld [vmem:[#allocation5 + $0x378] sm:$0xff]
    %v219 = vld [vmem:[#allocation5 + $0x380] sm:$0xff]
    %v220 = vld [vmem:[#allocation5 + $0x388] sm:$0xff]
    %v221 = vld [vmem:[#allocation5 + $0x390] sm:$0xff]
    %v222 = vld [vmem:[#allocation5 + $0x398] sm:$0xff]
    %v223 = vld [vmem:[#allocation5 + $0x3a0] sm:$0xff]
    %v224 = vld [vmem:[#allocation5 + $0x3a8] sm:$0xff]
    %v225 = vld [vmem:[#allocation5 + $0x3b0] sm:$0xff]
    %v226 = vld [vmem:[#allocation5 + $0x3b8] sm:$0xff]
    %v227 = vld [vmem:[#allocation5 + $0x3c0] sm:$0xff]
    %v228 = vld [vmem:[#allocation5 + $0x3c8] sm:$0xff]
    %v229 = vld [vmem:[#allocation5 + $0x3d0] sm:$0xff]
    %v230 = vld [vmem:[#allocation5 + $0x3d8] sm:$0xff]
    %v231 = vld [vmem:[#allocation5 + $0x3e0] sm:$0xff]
    %v232 = vld [vmem:[#allocation5 + $0x3e8] sm:$0xff]
    %v233 = vld [vmem:[#allocation5 + $0x3f0] sm:$0xff]
    %v234 = vld [vmem:[#allocation5 + $0x3f8] sm:$0xff]
    %v235 = vld [vmem:[#allocation5 + $0x400] sm:$0xff]
    %v236 = vld [vmem:[#allocation5 + $0x408] sm:$0xff]
    %v237 = vld [vmem:[#allocation5 + $0x410] sm:$0xff]
    %v238 = vld [vmem:[#allocation5 + $0x418] sm:$0xff]
    %v239 = vld [vmem:[#allocation5 + $0x420] sm:$0xff]
    %v240 = vld [vmem:[#allocation5 + $0x428] sm:$0xff]
    %v241 = vld [vmem:[#allocation5 + $0x430] sm:$0xff]
    %v242 = vld [vmem:[#allocation5 + $0x438] sm:$0xff]
    %v243 = vld [vmem:[#allocation5 + $0x440] sm:$0xff]
    %v244 = vld [vmem:[#allocation5 + $0x448] sm:$0xff]
    %v245 = vld [vmem:[#allocation5 + $0x450] sm:$0xff]
    %v246 = vld [vmem:[#allocation5 + $0x458] sm:$0xff]
    %v247 = vld [vmem:[#allocation5 + $0x460] sm:$0xff]
    %v248 = vld [vmem:[#allocation5 + $0x468] sm:$0xff]
    %v249 = vld [vmem:[#allocation5 + $0x470] sm:$0xff]
    %v250 = vld [vmem:[#allocation5 + $0x478] sm:$0xff]
    %v251 = vld [vmem:[#allocation5 + $0x480] sm:$0xff]
    %v252 = vld [vmem:[#allocation5 + $0x488] sm:$0xff]
    %v253 = vld [vmem:[#allocation5 + $0x490] sm:$0xff]
    %v254 = vld [vmem:[#allocation5 + $0x498] sm:$0xff]
    %v255 = vld [vmem:[#allocation5 + $0x4a0] sm:$0xff]
    %v256 = vld [vmem:[#allocation5 + $0x4a8] sm:$0xff]
    %v257 = vld [vmem:[#allocation5 + $0x4b0] sm:$0xff]
    %v258 = vld [vmem:[#allocation5 + $0x4b8] sm:$0xff]
    %v259 = vld [vmem:[#allocation5 + $0x4c0] sm:$0xff]
    %v260 = vld [vmem:[#allocation5 + $0x4c8] sm:$0xff]
    %v261 = vld [vmem:[#allocation5 + $0x4d0] sm:$0xff]
    %v262 = vld [vmem:[#allocation5 + $0x4d8] sm:$0xff]
    %v263 = vld [vmem:[#allocation5 + $0x4e0] sm:$0xff]
    %v264 = vld [vmem:[#allocation5 + $0x4e8] sm:$0xff]
    %v265 = vld [vmem:[#allocation5 + $0x4f0] sm:$0xff]
    %v266 = vld [vmem:[#allocation5 + $0x4f8] sm:$0xff]
    %v267 = vld [vmem:[#allocation5 + $0x500] sm:$0xff]
    %v268 = vld [vmem:[#allocation5 + $0x508] sm:$0xff]
    %v269 = vld [vmem:[#allocation5 + $0x510] sm:$0xff]
    %v270 = vld [vmem:[#allocation5 + $0x518] sm:$0xff]
    %v271 = vld [vmem:[#allocation5 + $0x520] sm:$0xff]
    %v272 = vld [vmem:[#allocation5 + $0x528] sm:$0xff]
    %v273 = vld [vmem:[#allocation5 + $0x530] sm:$0xff]
    %v274 = vld [vmem:[#allocation5 + $0x538] sm:$0xff]
    %v275 = vld [vmem:[#allocation5 + $0x540] sm:$0xff]
    %v276 = vld [vmem:[#allocation5 + $0x548] sm:$0xff]
    %v277 = vld [vmem:[#allocation5 + $0x550] sm:$0xff]
    %v278 = vld [vmem:[#allocation5 + $0x558] sm:$0xff]
    %v279 = vld [vmem:[#allocation5 + $0x560] sm:$0xff]
    %v280 = vld [vmem:[#allocation5 + $0x568] sm:$0xff]
    %v281 = vld [vmem:[#allocation5 + $0x570] sm:$0xff]
    %v282 = vld [vmem:[#allocation5 + $0x578] sm:$0xff]
    %v283 = vld [vmem:[#allocation5 + $0x580] sm:$0xff]
    %v284 = vld [vmem:[#allocation5 + $0x588] sm:$0xff]
    %v285 = vld [vmem:[#allocation5 + $0x590] sm:$0xff]
    %v286 = vld [vmem:[#allocation5 + $0x598] sm:$0xff]
    %v287 = vld [vmem:[#allocation5 + $0x5a0] sm:$0xff]
    %v288 = vld [vmem:[#allocation5 + $0x5a8] sm:$0xff]
    %v289 = vld [vmem:[#allocation5 + $0x5b0] sm:$0xff]
    %v290 = vld [vmem:[#allocation5 + $0x5b8] sm:$0xff]
    %v291 = vld [vmem:[#allocation5 + $0x5c0] sm:$0xff]
    %v292 = vld [vmem:[#allocation5 + $0x5c8] sm:$0xff]
    %v293 = vld [vmem:[#allocation5 + $0x5d0] sm:$0xff]
    %v294 = vld [vmem:[#allocation5 + $0x5d8] sm:$0xff]
    %v295 = vld [vmem:[#allocation5 + $0x5e0] sm:$0xff]
    %v296 = vld [vmem:[#allocation5 + $0x5e8] sm:$0xff]
    %v297 = vld [vmem:[#allocation5 + $0x5f0] sm:$0xff]
    %v298 = vld [vmem:[#allocation5 + $0x5f8] sm:$0xff]
    %v299 = vld [vmem:[#allocation5 + $0x600] sm:$0xff]
    %v300 = vld [vmem:[#allocation5 + $0x608] sm:$0xff]
    %v301 = vld [vmem:[#allocation5 + $0x610] sm:$0xff]
    %v302 = vld [vmem:[#allocation5 + $0x618] sm:$0xff]
    %v303 = vld [vmem:[#allocation5 + $0x620] sm:$0xff]
    %v304 = vld [vmem:[#allocation5 + $0x628] sm:$0xff]
    %v305 = vld [vmem:[#allocation5 + $0x630] sm:$0xff]
    %v306 = vld [vmem:[#allocation5 + $0x638] sm:$0xff]
    %v307 = vld [vmem:[#allocation5 + $0x640] sm:$0xff]
    %v308 = vld [vmem:[#allocation5 + $0x648] sm:$0xff]
    %v309 = vld [vmem:[#allocation5 + $0x650] sm:$0xff]
    %v310 = vld [vmem:[#allocation5 + $0x658] sm:$0xff]
    %v311 = vld [vmem:[#allocation5 + $0x660] sm:$0xff]
    %v312 = vld [vmem:[#allocation5 + $0x668] sm:$0xff]
    %v313 = vld [vmem:[#allocation5 + $0x670] sm:$0xff]
    %v314 = vld [vmem:[#allocation5 + $0x678] sm:$0xff]
    %v315 = vld [vmem:[#allocation5 + $0x680] sm:$0xff]
    %v316 = vld [vmem:[#allocation5 + $0x688] sm:$0xff]
    %v317 = vld [vmem:[#allocation5 + $0x690] sm:$0xff]
    %v318 = vld [vmem:[#allocation5 + $0x698] sm:$0xff]
    %v319 = vld [vmem:[#allocation5 + $0x6a0] sm:$0xff]
    %v320 = vld [vmem:[#allocation5 + $0x6a8] sm:$0xff]
    %v321 = vld [vmem:[#allocation5 + $0x6b0] sm:$0xff]
    %v322 = vld [vmem:[#allocation5 + $0x6b8] sm:$0xff]
    %v323 = vld [vmem:[#allocation5 + $0x6c0] sm:$0xff]
    %v324 = vld [vmem:[#allocation5 + $0x6c8] sm:$0xff]
    %v325 = vld [vmem:[#allocation5 + $0x6d0] sm:$0xff]
    %v326 = vld [vmem:[#allocation5 + $0x6d8] sm:$0xff]
    %v327 = vld [vmem:[#allocation5 + $0x6e0] sm:$0xff]
    %v328 = vld [vmem:[#allocation5 + $0x6e8] sm:$0xff]
    %v329 = vld [vmem:[#allocation5 + $0x6f0] sm:$0xff]
    %v330 = vld [vmem:[#allocation5 + $0x6f8] sm:$0xff]
    %v331 = vld [vmem:[#allocation5 + $0x700] sm:$0xff]
    %v332 = vld [vmem:[#allocation5 + $0x708] sm:$0xff]
    %v333 = vld [vmem:[#allocation5 + $0x710] sm:$0xff]
    %v334 = vld [vmem:[#allocation5 + $0x718] sm:$0xff]
    %v335 = vld [vmem:[#allocation5 + $0x720] sm:$0xff]
    %v336 = vld [vmem:[#allocation5 + $0x728] sm:$0xff]
    %v337 = vld [vmem:[#allocation5 + $0x730] sm:$0xff]
    %v338 = vld [vmem:[#allocation5 + $0x738] sm:$0xff]
    %v339 = vld [vmem:[#allocation5 + $0x740] sm:$0xff]
    %v340 = vld [vmem:[#allocation5 + $0x748] sm:$0xff]
    %v341 = vld [vmem:[#allocation5 + $0x750] sm:$0xff]
    %v342 = vld [vmem:[#allocation5 + $0x758] sm:$0xff]
    %v343 = vld [vmem:[#allocation5 + $0x760] sm:$0xff]
    %v344 = vld [vmem:[#allocation5 + $0x768] sm:$0xff]
    %v345 = vld [vmem:[#allocation5 + $0x770] sm:$0xff]
    %v346 = vld [vmem:[#allocation5 + $0x778] sm:$0xff]
    %v347 = vld [vmem:[#allocation5 + $0x780] sm:$0xff]
    %v348 = vld [vmem:[#allocation5 + $0x788] sm:$0xff]
    %v349 = vld [vmem:[#allocation5 + $0x790] sm:$0xff]
    %v350 = vld [vmem:[#allocation5 + $0x798] sm:$0xff]
    %v351 = vld [vmem:[#allocation5 + $0x7a0] sm:$0xff]
    %v352 = vld [vmem:[#allocation5 + $0x7a8] sm:$0xff]
    %v353 = vld [vmem:[#allocation5 + $0x7b0] sm:$0xff]
    %v354 = vld [vmem:[#allocation5 + $0x7b8] sm:$0xff]
    %v355 = vld [vmem:[#allocation5 + $0x7c0] sm:$0xff]
    %v356 = vld [vmem:[#allocation5 + $0x7c8] sm:$0xff]
    %v357 = vld [vmem:[#allocation5 + $0x7d0] sm:$0xff]
    %v358 = vld [vmem:[#allocation5 + $0x7d8] sm:$0xff]
    %v359 = vld [vmem:[#allocation5 + $0x7e0] sm:$0xff]
    %v360 = vld [vmem:[#allocation5 + $0x7e8] sm:$0xff]
    %v361 = vld [vmem:[#allocation5 + $0x7f0] sm:$0xff]
    %v362 = vld [vmem:[#allocation5 + $0x7f8] sm:$0xff]
    %v363 = vld [vmem:[#allocation5 + $0x800] sm:$0xff]
    %v364 = vld [vmem:[#allocation5 + $0x808] sm:$0xff]
    %v365 = vld [vmem:[#allocation5 + $0x810] sm:$0xff]
    %v366 = vld [vmem:[#allocation5 + $0x818] sm:$0xff]
    %v367 = vld [vmem:[#allocation5 + $0x820] sm:$0xff]
    %v368 = vld [vmem:[#allocation5 + $0x828] sm:$0xff]
    %v369 = vld [vmem:[#allocation5 + $0x830] sm:$0xff]
    %v370 = vld [vmem:[#allocation5 + $0x838] sm:$0xff]
    %v371 = vld [vmem:[#allocation5 + $0x840] sm:$0xff]
    %v372 = vld [vmem:[#allocation5 + $0x848] sm:$0xff]
    %v373 = vld [vmem:[#allocation5 + $0x850] sm:$0xff]
    %v374 = vld [vmem:[#allocation5 + $0x858] sm:$0xff]
    %v375 = vld [vmem:[#allocation5 + $0x860] sm:$0xff]
    %v376 = vld [vmem:[#allocation5 + $0x868] sm:$0xff]
    %v377 = vld [vmem:[#allocation5 + $0x870] sm:$0xff]
    %v378 = vld [vmem:[#allocation5 + $0x878] sm:$0xff]
    %v379 = vld [vmem:[#allocation5 + $0x880] sm:$0xff]
    %v380 = vld [vmem:[#allocation5 + $0x888] sm:$0xff]
    %v381 = vld [vmem:[#allocation5 + $0x890] sm:$0xff]
    %v382 = vld [vmem:[#allocation5 + $0x898] sm:$0xff]
    %v383 = vld [vmem:[#allocation5 + $0x8a0] sm:$0xff]
    %v384 = vld [vmem:[#allocation5 + $0x8a8] sm:$0xff]
    %v385 = vld [vmem:[#allocation5 + $0x8b0] sm:$0xff]
    %v386 = vld [vmem:[#allocation5 + $0x8b8] sm:$0xff]
    %v387 = vld [vmem:[#allocation5 + $0x8c0] sm:$0xff]
    %v388 = vld [vmem:[#allocation5 + $0x8c8] sm:$0xff]
    %v389 = vld [vmem:[#allocation5 + $0x8d0] sm:$0xff]
    %v390 = vld [vmem:[#allocation5 + $0x8d8] sm:$0xff]
    %v391 = vld [vmem:[#allocation5 + $0x8e0] sm:$0xff]
    %v392 = vld [vmem:[#allocation5 + $0x8e8] sm:$0xff]
    %v393 = vld [vmem:[#allocation5 + $0x8f0] sm:$0xff]
    %v394 = vld [vmem:[#allocation5 + $0x8f8] sm:$0xff]
    %v395 = vld [vmem:[#allocation5 + $0x900] sm:$0xff]
    %v396 = vld [vmem:[#allocation5 + $0x908] sm:$0xff]
    %v397 = vld [vmem:[#allocation5 + $0x910] sm:$0xff]
    %v398 = vld [vmem:[#allocation5 + $0x918] sm:$0xff]
    %v399 = vld [vmem:[#allocation5 + $0x920] sm:$0xff]
    %v400 = vld [vmem:[#allocation5 + $0x928] sm:$0xff]
    %v401 = vld [vmem:[#allocation5 + $0x930] sm:$0xff]
    %v402 = vld [vmem:[#allocation5 + $0x938] sm:$0xff]
    %v403 = vld [vmem:[#allocation5 + $0x940] sm:$0xff]
    %v404 = vld [vmem:[#allocation5 + $0x948] sm:$0xff]
    %v405 = vld [vmem:[#allocation5 + $0x950] sm:$0xff]
    %v406 = vld [vmem:[#allocation5 + $0x958] sm:$0xff]
    %v407 = vld [vmem:[#allocation5 + $0x960] sm:$0xff]
    %v408 = vld [vmem:[#allocation5 + $0x968] sm:$0xff]
    %v409 = vld [vmem:[#allocation5 + $0x970] sm:$0xff]
    %v410 = vld [vmem:[#allocation5 + $0x978] sm:$0xff]
    %v411 = vld [vmem:[#allocation5 + $0x980] sm:$0xff]
    %v412 = vld [vmem:[#allocation5 + $0x988] sm:$0xff]
    %v413 = vld [vmem:[#allocation5 + $0x990] sm:$0xff]
    %v414 = vld [vmem:[#allocation5 + $0x998] sm:$0xff]
    %v415 = vld [vmem:[#allocation5 + $0x9a0] sm:$0xff]
    %v416 = vld [vmem:[#allocation5 + $0x9a8] sm:$0xff]
    %v417 = vld [vmem:[#allocation5 + $0x9b0] sm:$0xff]
    %v418 = vld [vmem:[#allocation5 + $0x9b8] sm:$0xff]
    %v419 = vld [vmem:[#allocation5 + $0x9c0] sm:$0xff]
    %v420 = vld [vmem:[#allocation5 + $0x9c8] sm:$0xff]
    %v421 = vld [vmem:[#allocation5 + $0x9d0] sm:$0xff]
    %v422 = vld [vmem:[#allocation5 + $0x9d8] sm:$0xff]
    %v423 = vld [vmem:[#allocation5 + $0x9e0] sm:$0xff]
    %v424 = vld [vmem:[#allocation5 + $0x9e8] sm:$0xff]
    %v425 = vld [vmem:[#allocation5 + $0x9f0] sm:$0xff]
    %v426 = vld [vmem:[#allocation5 + $0x9f8] sm:$0xff]
    %v427 = vld [vmem:[#allocation5 + $0xa00] sm:$0xff]
    %v428 = vld [vmem:[#allocation5 + $0xa08] sm:$0xff]
    %v429 = vld [vmem:[#allocation5 + $0xa10] sm:$0xff]
    %v430 = vld [vmem:[#allocation5 + $0xa18] sm:$0xff]
    %v431 = vld [vmem:[#allocation5 + $0xa20] sm:$0xff]
    %v432 = vld [vmem:[#allocation5 + $0xa28] sm:$0xff]
    %v433 = vld [vmem:[#allocation5 + $0xa30] sm:$0xff]
    %v434 = vld [vmem:[#allocation5 + $0xa38] sm:$0xff]
    %v435 = vld [vmem:[#allocation5 + $0xa40] sm:$0xff]
    %v436 = vld [vmem:[#allocation5 + $0xa48] sm:$0xff]
    %v437 = vld [vmem:[#allocation5 + $0xa50] sm:$0xff]
    %v438 = vld [vmem:[#allocation5 + $0xa58] sm:$0xff]
    %v439 = vld [vmem:[#allocation5 + $0xa60] sm:$0xff]
    %v440 = vld [vmem:[#allocation5 + $0xa68] sm:$0xff]
    %v441 = vld [vmem:[#allocation5 + $0xa70] sm:$0xff]
    %v442 = vld [vmem:[#allocation5 + $0xa78] sm:$0xff]
    %v443 = vld [vmem:[#allocation5 + $0xa80] sm:$0xff]
    %v444 = vld [vmem:[#allocation5 + $0xa88] sm:$0xff]
    %v445 = vld [vmem:[#allocation5 + $0xa90] sm:$0xff]
    %v446 = vld [vmem:[#allocation5 + $0xa98] sm:$0xff]
    %v447 = vld [vmem:[#allocation5 + $0xaa0] sm:$0xff]
    %v448 = vld [vmem:[#allocation5 + $0xaa8] sm:$0xff]
    %v449 = vld [vmem:[#allocation5 + $0xab0] sm:$0xff]
    %v450 = vld [vmem:[#allocation5 + $0xab8] sm:$0xff]
    %v451 = vld [vmem:[#allocation5 + $0xac0] sm:$0xff]
    %v452 = vld [vmem:[#allocation5 + $0xac8] sm:$0xff]
    %v453 = vld [vmem:[#allocation5 + $0xad0] sm:$0xff]
    %v454 = vld [vmem:[#allocation5 + $0xad8] sm:$0xff]
    %v455 = vld [vmem:[#allocation5 + $0xae0] sm:$0xff]
    %v456 = vld [vmem:[#allocation5 + $0xae8] sm:$0xff]
    %v457 = vld [vmem:[#allocation5 + $0xaf0] sm:$0xff]
    %v458 = vld [vmem:[#allocation5 + $0xaf8] sm:$0xff]
    %v459 = vld [vmem:[#allocation5 + $0xb00] sm:$0xff]
    %v460 = vld [vmem:[#allocation5 + $0xb08] sm:$0xff]
    %v461 = vld [vmem:[#allocation5 + $0xb10] sm:$0xff]
    %v462 = vld [vmem:[#allocation5 + $0xb18] sm:$0xff]
    %v463 = vld [vmem:[#allocation5 + $0xb20] sm:$0xff]
    %v464 = vld [vmem:[#allocation5 + $0xb28] sm:$0xff]
    %v465 = vld [vmem:[#allocation5 + $0xb30] sm:$0xff]
    %v466 = vld [vmem:[#allocation5 + $0xb38] sm:$0xff]
    %v467 = vld [vmem:[#allocation5 + $0xb40] sm:$0xff]
    %v468 = vld [vmem:[#allocation5 + $0xb48] sm:$0xff]
    %v469 = vld [vmem:[#allocation5 + $0xb50] sm:$0xff]
    %v470 = vld [vmem:[#allocation5 + $0xb58] sm:$0xff]
    %v471 = vld [vmem:[#allocation5 + $0xb60] sm:$0xff]
    %v472 = vld [vmem:[#allocation5 + $0xb68] sm:$0xff]
    %v473 = vld [vmem:[#allocation5 + $0xb70] sm:$0xff]
    %v474 = vld [vmem:[#allocation5 + $0xb78] sm:$0xff]
    %v475 = vld [vmem:[#allocation5 + $0xb80] sm:$0xff]
    %v476 = vld [vmem:[#allocation5 + $0xb88] sm:$0xff]
    %v477 = vld [vmem:[#allocation5 + $0xb90] sm:$0xff]
    %v478 = vld [vmem:[#allocation5 + $0xb98] sm:$0xff]
    %v479 = vld [vmem:[#allocation5 + $0xba0] sm:$0xff]
    %v480 = vld [vmem:[#allocation5 + $0xba8] sm:$0xff]
    %v481 = vld [vmem:[#allocation5 + $0xbb0] sm:$0xff]
    %v482 = vld [vmem:[#allocation5 + $0xbb8] sm:$0xff]
    %v483 = vld [vmem:[#allocation5 + $0xbc0] sm:$0xff]
    %v484 = vld [vmem:[#allocation5 + $0xbc8] sm:$0xff]
    %v485 = vld [vmem:[#allocation5 + $0xbd0] sm:$0xff]
    %v486 = vld [vmem:[#allocation5 + $0xbd8] sm:$0xff]
    %v487 = vld [vmem:[#allocation5 + $0xbe0] sm:$0xff]
    %v488 = vld [vmem:[#allocation5 + $0xbe8] sm:$0xff]
    %v489 = vld [vmem:[#allocation5 + $0xbf0] sm:$0xff]
    %v490 = vld [vmem:[#allocation5 + $0xbf8] sm:$0xff]
    %v491 = vld [vmem:[#allocation7] sm:$0x1]
    %v493 = vlaneseq
    %v494 = vshrl.u32 %v493, 7
    %v495 = vsub.s32 0, %v494
    %v496 = vrot.slane %v491, %v495
    %498 = vmatprep.subr.mxu0 0.0
    %499 = vmatpush1.msra.mxu0 %v122
    %500 = vmatprep.subr.mxu0 0.0
    %501 = vmatpush1.msra.mxu0 %v121
    %502 = vmatprep.subr.mxu0 0.0
    %503 = vmatpush1.msra.mxu0 %v120
    %504 = vmatprep.subr.mxu0 0.0
    %505 = vmatpush1.msra.mxu0 %v119
    %506 = vmatprep.subr.mxu0 0.0
    %507 = vmatpush1.msra.mxu0 %v118
    %508 = vmatprep.subr.mxu0 0.0
    %509 = vmatpush1.msra.mxu0 %v117
    %510 = vmatprep.subr.mxu0 0.0
    %511 = vmatpush1.msra.mxu0 %v116
    %512 = vmatprep.subr.mxu0 0.0
    %513 = vmatpush1.msra.mxu0 %v115
    %514 = vmatprep.subr.mxu0 0.0
    %515 = vmatpush1.msra.mxu0 %v114
    %516 = vmatprep.subr.mxu0 0.0
    %517 = vmatpush1.msra.mxu0 %v113
    %518 = vmatprep.subr.mxu0 0.0
    %519 = vmatpush1.msra.mxu0 %v112
    %520 = vmatprep.subr.mxu0 0.0
    %521 = vmatpush1.msra.mxu0 %v111
    %522 = vmatprep.subr.mxu0 0.0
    %523 = vmatpush1.msra.mxu0 %v110
    %524 = vmatprep.subr.mxu0 0.0
    %525 = vmatpush1.msra.mxu0 %v109
    %526 = vmatprep.subr.mxu0 0.0
    %527 = vmatpush1.msra.mxu0 %v108
    %528 = vmatprep.subr.mxu0 0.0
    %529 = vmatpush1.msra.mxu0 %v107
    %530 = vmatprep.subr.mxu0 0.0
    %531 = vmatpush2.msra.mxu0 %v138
    %532 = vmatprep.subr.mxu0 0.0
    %533 = vmatpush2.msra.mxu0 %v137
    %534 = vmatprep.subr.mxu0 0.0
    %535 = vmatpush2.msra.mxu0 %v136
    %536 = vmatprep.subr.mxu0 0.0
    %537 = vmatpush2.msra.mxu0 %v135
    %538 = vmatprep.subr.mxu0 0.0
    %539 = vmatpush2.msra.mxu0 %v134
    %540 = vmatprep.subr.mxu0 0.0
    %541 = vmatpush2.msra.mxu0 %v133
    %542 = vmatprep.subr.mxu0 0.0
    %543 = vmatpush2.msra.mxu0 %v132
    %544 = vmatprep.subr.mxu0 0.0
    %545 = vmatpush2.msra.mxu0 %v131
    %546 = vmatprep.subr.mxu0 0.0
    %547 = vmatpush2.msra.mxu0 %v130
    %548 = vmatprep.subr.mxu0 0.0
    %549 = vmatpush2.msra.mxu0 %v129
    %550 = vmatprep.subr.mxu0 0.0
    %551 = vmatpush2.msra.mxu0 %v128
    %552 = vmatprep.subr.mxu0 0.0
    %553 = vmatpush2.msra.mxu0 %v127
    %554 = vmatprep.subr.mxu0 0.0
    %555 = vmatpush2.msra.mxu0 %v126
    %556 = vmatprep.subr.mxu0 0.0
    %557 = vmatpush2.msra.mxu0 %v125
    %558 = vmatprep.subr.mxu0 0.0
    %559 = vmatpush2.msra.mxu0 %v124
    %560 = vmatprep.subr.mxu0 0.0
    %561 = vmatpush2.msra.mxu0 %v123
    %562 = vmatprep.mubr.f32.mxu0 %v84
    %563 = vmatmul.mubr.f32.gmra.mxu0 %v83
    %v564 = vpop.f32.mrf.mxu0
    %v565 = vadd.f32 %v496, %v564
    %v566 = vpop.f32.mrf.mxu0
    %567 = vdwg.mxu0
    %568 = vmatprep.subr.mxu0 0.0
    %569 = vmatpush1.msra.mxu0 %v154
    %570 = vmatprep.subr.mxu0 0.0
    %571 = vmatpush1.msra.mxu0 %v153
    %572 = vmatprep.subr.mxu0 0.0
    %573 = vmatpush1.msra.mxu0 %v152
    %574 = vmatprep.subr.mxu0 0.0
    %575 = vmatpush1.msra.mxu0 %v151
    %576 = vmatprep.subr.mxu0 0.0
    %577 = vmatpush1.msra.mxu0 %v150
    %578 = vmatprep.subr.mxu0 0.0
    %579 = vmatpush1.msra.mxu0 %v149
    %580 = vmatprep.subr.mxu0 0.0
    %581 = vmatpush1.msra.mxu0 %v148
    %582 = vmatprep.subr.mxu0 0.0
    %583 = vmatpush1.msra.mxu0 %v147
    %584 = vmatprep.subr.mxu0 0.0
    %585 = vmatpush1.msra.mxu0 %v146
    %586 = vmatprep.subr.mxu0 0.0
    %587 = vmatpush1.msra.mxu0 %v145
    %588 = vmatprep.subr.mxu0 0.0
    %589 = vmatpush1.msra.mxu0 %v144
    %590 = vmatprep.subr.mxu0 0.0
    %591 = vmatpush1.msra.mxu0 %v143
    %592 = vmatprep.subr.mxu0 0.0
    %593 = vmatpush1.msra.mxu0 %v142
    %594 = vmatprep.subr.mxu0 0.0
    %595 = vmatpush1.msra.mxu0 %v141
    %596 = vmatprep.subr.mxu0 0.0
    %597 = vmatpush1.msra.mxu0 %v140
    %598 = vmatprep.subr.mxu0 0.0
    %599 = vmatpush1.msra.mxu0 %v139
    %600 = vmatprep.subr.mxu0 0.0
    %601 = vmatpush2.msra.mxu0 %v170
    %602 = vmatprep.subr.mxu0 0.0
    %603 = vmatpush2.msra.mxu0 %v169
    %604 = vmatprep.subr.mxu0 0.0
    %605 = vmatpush2.msra.mxu0 %v168
    %606 = vmatprep.subr.mxu0 0.0
    %607 = vmatpush2.msra.mxu0 %v167
    %608 = vmatprep.subr.mxu0 0.0
    %609 = vmatpush2.msra.mxu0 %v166
    %610 = vmatprep.subr.mxu0 0.0
    %611 = vmatpush2.msra.mxu0 %v165
    %612 = vmatprep.subr.mxu0 0.0
    %613 = vmatpush2.msra.mxu0 %v164
    %614 = vmatprep.subr.mxu0 0.0
    %615 = vmatpush2.msra.mxu0 %v163
    %616 = vmatprep.subr.mxu0 0.0
    %617 = vmatpush2.msra.mxu0 %v162
    %618 = vmatprep.subr.mxu0 0.0
    %619 = vmatpush2.msra.mxu0 %v161
    %620 = vmatprep.subr.mxu0 0.0
    %621 = vmatpush2.msra.mxu0 %v160
    %622 = vmatprep.subr.mxu0 0.0
    %623 = vmatpush2.msra.mxu0 %v159
    %624 = vmatprep.subr.mxu0 0.0
    %625 = vmatpush2.msra.mxu0 %v158
    %626 = vmatprep.subr.mxu0 0.0
    %627 = vmatpush2.msra.mxu0 %v157
    %628 = vmatprep.subr.mxu0 0.0
    %629 = vmatpush2.msra.mxu0 %v156
    %630 = vmatprep.subr.mxu0 0.0
    %631 = vmatpush2.msra.mxu0 %v155
    %632 = vmatprep.mubr.f32.mxu0 %v86
    %633 = vmatmul.mubr.f32.gmra.mxu0 %v85
    %v634 = vpop.f32.mrf.mxu0
    %v635 = vadd.f32 %v565, %v634
    %v636 = vpop.f32.mrf.mxu0
    %637 = vdwg.mxu0
    %638 = vmatprep.subr.mxu0 0.0
    %639 = vmatpush1.msra.mxu0 %v186
    %640 = vmatprep.subr.mxu0 0.0
    %641 = vmatpush1.msra.mxu0 %v185
    %642 = vmatprep.subr.mxu0 0.0
    %643 = vmatpush1.msra.mxu0 %v184
    %644 = vmatprep.subr.mxu0 0.0
    %645 = vmatpush1.msra.mxu0 %v183
    %646 = vmatprep.subr.mxu0 0.0
    %647 = vmatpush1.msra.mxu0 %v182
    %648 = vmatprep.subr.mxu0 0.0
    %649 = vmatpush1.msra.mxu0 %v181
    %650 = vmatprep.subr.mxu0 0.0
    %651 = vmatpush1.msra.mxu0 %v180
    %652 = vmatprep.subr.mxu0 0.0
    %653 = vmatpush1.msra.mxu0 %v179
    %654 = vmatprep.subr.mxu0 0.0
    %655 = vmatpush1.msra.mxu0 %v178
    %656 = vmatprep.subr.mxu0 0.0
    %657 = vmatpush1.msra.mxu0 %v177
    %658 = vmatprep.subr.mxu0 0.0
    %659 = vmatpush1.msra.mxu0 %v176
    %660 = vmatprep.subr.mxu0 0.0
    %661 = vmatpush1.msra.mxu0 %v175
    %662 = vmatprep.subr.mxu0 0.0
    %663 = vmatpush1.msra.mxu0 %v174
    %664 = vmatprep.subr.mxu0 0.0
    %665 = vmatpush1.msra.mxu0 %v173
    %666 = vmatprep.subr.mxu0 0.0
    %667 = vmatpush1.msra.mxu0 %v172
    %668 = vmatprep.subr.mxu0 0.0
    %669 = vmatpush1.msra.mxu0 %v171
    %670 = vmatprep.subr.mxu0 0.0
    %671 = vmatpush2.msra.mxu0 %v202
    %672 = vmatprep.subr.mxu0 0.0
    %673 = vmatpush2.msra.mxu0 %v201
    %674 = vmatprep.subr.mxu0 0.0
    %675 = vmatpush2.msra.mxu0 %v200
    %676 = vmatprep.subr.mxu0 0.0
    %677 = vmatpush2.msra.mxu0 %v199
    %678 = vmatprep.subr.mxu0 0.0
    %679 = vmatpush2.msra.mxu0 %v198
    %680 = vmatprep.subr.mxu0 0.0
    %681 = vmatpush2.msra.mxu0 %v197
    %682 = vmatprep.subr.mxu0 0.0
    %683 = vmatpush2.msra.mxu0 %v196
    %684 = vmatprep.subr.mxu0 0.0
    %685 = vmatpush2.msra.mxu0 %v195
    %686 = vmatprep.subr.mxu0 0.0
    %687 = vmatpush2.msra.mxu0 %v194
    %688 = vmatprep.subr.mxu0 0.0
    %689 = vmatpush2.msra.mxu0 %v193
    %690 = vmatprep.subr.mxu0 0.0
    %691 = vmatpush2.msra.mxu0 %v192
    %692 = vmatprep.subr.mxu0 0.0
    %693 = vmatpush2.msra.mxu0 %v191
    %694 = vmatprep.subr.mxu0 0.0
    %695 = vmatpush2.msra.mxu0 %v190
    %696 = vmatprep.subr.mxu0 0.0
    %697 = vmatpush2.msra.mxu0 %v189
    %698 = vmatprep.subr.mxu0 0.0
    %699 = vmatpush2.msra.mxu0 %v188
    %700 = vmatprep.subr.mxu0 0.0
    %701 = vmatpush2.msra.mxu0 %v187
    %702 = vmatprep.mubr.f32.mxu0 %v88
    %703 = vmatmul.mubr.f32.gmra.mxu0 %v87
    %v704 = vpop.f32.mrf.mxu0
    %v705 = vadd.f32 %v635, %v704
    %v706 = vpop.f32.mrf.mxu0
    %707 = vdwg.mxu0
    %708 = vmatprep.subr.mxu0 0.0
    %709 = vmatpush1.msra.mxu0 %v218
    %710 = vmatprep.subr.mxu0 0.0
    %711 = vmatpush1.msra.mxu0 %v217
    %712 = vmatprep.subr.mxu0 0.0
    %713 = vmatpush1.msra.mxu0 %v216
    %714 = vmatprep.subr.mxu0 0.0
    %715 = vmatpush1.msra.mxu0 %v215
    %716 = vmatprep.subr.mxu0 0.0
    %717 = vmatpush1.msra.mxu0 %v214
    %718 = vmatprep.subr.mxu0 0.0
    %719 = vmatpush1.msra.mxu0 %v213
    %720 = vmatprep.subr.mxu0 0.0
    %721 = vmatpush1.msra.mxu0 %v212
    %722 = vmatprep.subr.mxu0 0.0
    %723 = vmatpush1.msra.mxu0 %v211
    %724 = vmatprep.subr.mxu0 0.0
    %725 = vmatpush1.msra.mxu0 %v210
    %726 = vmatprep.subr.mxu0 0.0
    %727 = vmatpush1.msra.mxu0 %v209
    %728 = vmatprep.subr.mxu0 0.0
    %729 = vmatpush1.msra.mxu0 %v208
    %730 = vmatprep.subr.mxu0 0.0
    %731 = vmatpush1.msra.mxu0 %v207
    %732 = vmatprep.subr.mxu0 0.0
    %733 = vmatpush1.msra.mxu0 %v206
    %734 = vmatprep.subr.mxu0 0.0
    %735 = vmatpush1.msra.mxu0 %v205
    %736 = vmatprep.subr.mxu0 0.0
    %737 = vmatpush1.msra.mxu0 %v204
    %738 = vmatprep.subr.mxu0 0.0
    %739 = vmatpush1.msra.mxu0 %v203
    %740 = vmatprep.subr.mxu0 0.0
    %741 = vmatpush2.msra.mxu0 %v234
    %742 = vmatprep.subr.mxu0 0.0
    %743 = vmatpush2.msra.mxu0 %v233
    %744 = vmatprep.subr.mxu0 0.0
    %745 = vmatpush2.msra.mxu0 %v232
    %746 = vmatprep.subr.mxu0 0.0
    %747 = vmatpush2.msra.mxu0 %v231
    %748 = vmatprep.subr.mxu0 0.0
    %749 = vmatpush2.msra.mxu0 %v230
    %750 = vmatprep.subr.mxu0 0.0
    %751 = vmatpush2.msra.mxu0 %v229
    %752 = vmatprep.subr.mxu0 0.0
    %753 = vmatpush2.msra.mxu0 %v228
    %754 = vmatprep.subr.mxu0 0.0
    %755 = vmatpush2.msra.mxu0 %v227
    %756 = vmatprep.subr.mxu0 0.0
    %757 = vmatpush2.msra.mxu0 %v226
    %758 = vmatprep.subr.mxu0 0.0
    %759 = vmatpush2.msra.mxu0 %v225
    %760 = vmatprep.subr.mxu0 0.0
    %761 = vmatpush2.msra.mxu0 %v224
    %762 = vmatprep.subr.mxu0 0.0
    %763 = vmatpush2.msra.mxu0 %v223
    %764 = vmatprep.subr.mxu0 0.0
    %765 = vmatpush2.msra.mxu0 %v222
    %766 = vmatprep.subr.mxu0 0.0
    %767 = vmatpush2.msra.mxu0 %v221
    %768 = vmatprep.subr.mxu0 0.0
    %769 = vmatpush2.msra.mxu0 %v220
    %770 = vmatprep.subr.mxu0 0.0
    %771 = vmatpush2.msra.mxu0 %v219
    %772 = vmatprep.mubr.f32.mxu0 %v90
    %773 = vmatmul.mubr.f32.gmra.mxu0 %v89
    %v774 = vpop.f32.mrf.mxu0
    %v775 = vadd.f32 %v705, %v774
    %v776 = vpop.f32.mrf.mxu0
    %777 = vdwg.mxu0
    %778 = vmatprep.subr.mxu0 0.0
    %779 = vmatpush1.msra.mxu0 %v250
    %780 = vmatprep.subr.mxu0 0.0
    %781 = vmatpush1.msra.mxu0 %v249
    %782 = vmatprep.subr.mxu0 0.0
    %783 = vmatpush1.msra.mxu0 %v248
    %784 = vmatprep.subr.mxu0 0.0
    %785 = vmatpush1.msra.mxu0 %v247
    %786 = vmatprep.subr.mxu0 0.0
    %787 = vmatpush1.msra.mxu0 %v246
    %788 = vmatprep.subr.mxu0 0.0
    %789 = vmatpush1.msra.mxu0 %v245
    %790 = vmatprep.subr.mxu0 0.0
    %791 = vmatpush1.msra.mxu0 %v244
    %792 = vmatprep.subr.mxu0 0.0
    %793 = vmatpush1.msra.mxu0 %v243
    %794 = vmatprep.subr.mxu0 0.0
    %795 = vmatpush1.msra.mxu0 %v242
    %796 = vmatprep.subr.mxu0 0.0
    %797 = vmatpush1.msra.mxu0 %v241
    %798 = vmatprep.subr.mxu0 0.0
    %799 = vmatpush1.msra.mxu0 %v240
    %800 = vmatprep.subr.mxu0 0.0
    %801 = vmatpush1.msra.mxu0 %v239
    %802 = vmatprep.subr.mxu0 0.0
    %803 = vmatpush1.msra.mxu0 %v238
    %804 = vmatprep.subr.mxu0 0.0
    %805 = vmatpush1.msra.mxu0 %v237
    %806 = vmatprep.subr.mxu0 0.0
    %807 = vmatpush1.msra.mxu0 %v236
    %808 = vmatprep.subr.mxu0 0.0
    %809 = vmatpush1.msra.mxu0 %v235
    %810 = vmatprep.subr.mxu0 0.0
    %811 = vmatpush2.msra.mxu0 %v266
    %812 = vmatprep.subr.mxu0 0.0
    %813 = vmatpush2.msra.mxu0 %v265
    %814 = vmatprep.subr.mxu0 0.0
    %815 = vmatpush2.msra.mxu0 %v264
    %816 = vmatprep.subr.mxu0 0.0
    %817 = vmatpush2.msra.mxu0 %v263
    %818 = vmatprep.subr.mxu0 0.0
    %819 = vmatpush2.msra.mxu0 %v262
    %820 = vmatprep.subr.mxu0 0.0
    %821 = vmatpush2.msra.mxu0 %v261
    %822 = vmatprep.subr.mxu0 0.0
    %823 = vmatpush2.msra.mxu0 %v260
    %824 = vmatprep.subr.mxu0 0.0
    %825 = vmatpush2.msra.mxu0 %v259
    %826 = vmatprep.subr.mxu0 0.0
    %827 = vmatpush2.msra.mxu0 %v258
    %828 = vmatprep.subr.mxu0 0.0
    %829 = vmatpush2.msra.mxu0 %v257
    %830 = vmatprep.subr.mxu0 0.0
    %831 = vmatpush2.msra.mxu0 %v256
    %832 = vmatprep.subr.mxu0 0.0
    %833 = vmatpush2.msra.mxu0 %v255
    %834 = vmatprep.subr.mxu0 0.0
    %835 = vmatpush2.msra.mxu0 %v254
    %836 = vmatprep.subr.mxu0 0.0
    %837 = vmatpush2.msra.mxu0 %v253
    %838 = vmatprep.subr.mxu0 0.0
    %839 = vmatpush2.msra.mxu0 %v252
    %840 = vmatprep.subr.mxu0 0.0
    %841 = vmatpush2.msra.mxu0 %v251
    %842 = vmatprep.mubr.f32.mxu0 %v92
    %843 = vmatmul.mubr.f32.gmra.mxu0 %v91
    %v844 = vpop.f32.mrf.mxu0
    %v845 = vadd.f32 %v775, %v844
    %v846 = vpop.f32.mrf.mxu0
    %847 = vdwg.mxu0
    %848 = vmatprep.subr.mxu0 0.0
    %849 = vmatpush1.msra.mxu0 %v282
    %850 = vmatprep.subr.mxu0 0.0
    %851 = vmatpush1.msra.mxu0 %v281
    %852 = vmatprep.subr.mxu0 0.0
    %853 = vmatpush1.msra.mxu0 %v280
    %854 = vmatprep.subr.mxu0 0.0
    %855 = vmatpush1.msra.mxu0 %v279
    %856 = vmatprep.subr.mxu0 0.0
    %857 = vmatpush1.msra.mxu0 %v278
    %858 = vmatprep.subr.mxu0 0.0
    %859 = vmatpush1.msra.mxu0 %v277
    %860 = vmatprep.subr.mxu0 0.0
    %861 = vmatpush1.msra.mxu0 %v276
    %862 = vmatprep.subr.mxu0 0.0
    %863 = vmatpush1.msra.mxu0 %v275
    %864 = vmatprep.subr.mxu0 0.0
    %865 = vmatpush1.msra.mxu0 %v274
    %866 = vmatprep.subr.mxu0 0.0
    %867 = vmatpush1.msra.mxu0 %v273
    %868 = vmatprep.subr.mxu0 0.0
    %869 = vmatpush1.msra.mxu0 %v272
    %870 = vmatprep.subr.mxu0 0.0
    %871 = vmatpush1.msra.mxu0 %v271
    %872 = vmatprep.subr.mxu0 0.0
    %873 = vmatpush1.msra.mxu0 %v270
    %874 = vmatprep.subr.mxu0 0.0
    %875 = vmatpush1.msra.mxu0 %v269
    %876 = vmatprep.subr.mxu0 0.0
    %877 = vmatpush1.msra.mxu0 %v268
    %878 = vmatprep.subr.mxu0 0.0
    %879 = vmatpush1.msra.mxu0 %v267
    %880 = vmatprep.subr.mxu0 0.0
    %881 = vmatpush2.msra.mxu0 %v298
    %882 = vmatprep.subr.mxu0 0.0
    %883 = vmatpush2.msra.mxu0 %v297
    %884 = vmatprep.subr.mxu0 0.0
    %885 = vmatpush2.msra.mxu0 %v296
    %886 = vmatprep.subr.mxu0 0.0
    %887 = vmatpush2.msra.mxu0 %v295
    %888 = vmatprep.subr.mxu0 0.0
    %889 = vmatpush2.msra.mxu0 %v294
    %890 = vmatprep.subr.mxu0 0.0
    %891 = vmatpush2.msra.mxu0 %v293
    %892 = vmatprep.subr.mxu0 0.0
    %893 = vmatpush2.msra.mxu0 %v292
    %894 = vmatprep.subr.mxu0 0.0
    %895 = vmatpush2.msra.mxu0 %v291
    %896 = vmatprep.subr.mxu0 0.0
    %897 = vmatpush2.msra.mxu0 %v290
    %898 = vmatprep.subr.mxu0 0.0
    %899 = vmatpush2.msra.mxu0 %v289
    %900 = vmatprep.subr.mxu0 0.0
    %901 = vmatpush2.msra.mxu0 %v288
    %902 = vmatprep.subr.mxu0 0.0
    %903 = vmatpush2.msra.mxu0 %v287
    %904 = vmatprep.subr.mxu0 0.0
    %905 = vmatpush2.msra.mxu0 %v286
    %906 = vmatprep.subr.mxu0 0.0
    %907 = vmatpush2.msra.mxu0 %v285
    %908 = vmatprep.subr.mxu0 0.0
    %909 = vmatpush2.msra.mxu0 %v284
    %910 = vmatprep.subr.mxu0 0.0
    %911 = vmatpush2.msra.mxu0 %v283
    %912 = vmatprep.mubr.f32.mxu0 %v94
    %913 = vmatmul.mubr.f32.gmra.mxu0 %v93
    %v914 = vpop.f32.mrf.mxu0
    %v915 = vadd.f32 %v845, %v914
    %v916 = vpop.f32.mrf.mxu0
    %917 = vdwg.mxu0
    %918 = vmatprep.subr.mxu0 0.0
    %919 = vmatpush1.msra.mxu0 %v314
    %920 = vmatprep.subr.mxu0 0.0
    %921 = vmatpush1.msra.mxu0 %v313
    %922 = vmatprep.subr.mxu0 0.0
    %923 = vmatpush1.msra.mxu0 %v312
    %924 = vmatprep.subr.mxu0 0.0
    %925 = vmatpush1.msra.mxu0 %v311
    %926 = vmatprep.subr.mxu0 0.0
    %927 = vmatpush1.msra.mxu0 %v310
    %928 = vmatprep.subr.mxu0 0.0
    %929 = vmatpush1.msra.mxu0 %v309
    %930 = vmatprep.subr.mxu0 0.0
    %931 = vmatpush1.msra.mxu0 %v308
    %932 = vmatprep.subr.mxu0 0.0
    %933 = vmatpush1.msra.mxu0 %v307
    %934 = vmatprep.subr.mxu0 0.0
    %935 = vmatpush1.msra.mxu0 %v306
    %936 = vmatprep.subr.mxu0 0.0
    %937 = vmatpush1.msra.mxu0 %v305
    %938 = vmatprep.subr.mxu0 0.0
    %939 = vmatpush1.msra.mxu0 %v304
    %940 = vmatprep.subr.mxu0 0.0
    %941 = vmatpush1.msra.mxu0 %v303
    %942 = vmatprep.subr.mxu0 0.0
    %943 = vmatpush1.msra.mxu0 %v302
    %944 = vmatprep.subr.mxu0 0.0
    %945 = vmatpush1.msra.mxu0 %v301
    %946 = vmatprep.subr.mxu0 0.0
    %947 = vmatpush1.msra.mxu0 %v300
    %948 = vmatprep.subr.mxu0 0.0
    %949 = vmatpush1.msra.mxu0 %v299
    %950 = vmatprep.subr.mxu0 0.0
    %951 = vmatpush2.msra.mxu0 %v330
    %952 = vmatprep.subr.mxu0 0.0
    %953 = vmatpush2.msra.mxu0 %v329
    %954 = vmatprep.subr.mxu0 0.0
    %955 = vmatpush2.msra.mxu0 %v328
    %956 = vmatprep.subr.mxu0 0.0
    %957 = vmatpush2.msra.mxu0 %v327
    %958 = vmatprep.subr.mxu0 0.0
    %959 = vmatpush2.msra.mxu0 %v326
    %960 = vmatprep.subr.mxu0 0.0
    %961 = vmatpush2.msra.mxu0 %v325
    %962 = vmatprep.subr.mxu0 0.0
    %963 = vmatpush2.msra.mxu0 %v324
    %964 = vmatprep.subr.mxu0 0.0
    %965 = vmatpush2.msra.mxu0 %v323
    %966 = vmatprep.subr.mxu0 0.0
    %967 = vmatpush2.msra.mxu0 %v322
    %968 = vmatprep.subr.mxu0 0.0
    %969 = vmatpush2.msra.mxu0 %v321
    %970 = vmatprep.subr.mxu0 0.0
    %971 = vmatpush2.msra.mxu0 %v320
    %972 = vmatprep.subr.mxu0 0.0
    %973 = vmatpush2.msra.mxu0 %v319
    %974 = vmatprep.subr.mxu0 0.0
    %975 = vmatpush2.msra.mxu0 %v318
    %976 = vmatprep.subr.mxu0 0.0
    %977 = vmatpush2.msra.mxu0 %v317
    %978 = vmatprep.subr.mxu0 0.0
    %979 = vmatpush2.msra.mxu0 %v316
    %980 = vmatprep.subr.mxu0 0.0
    %981 = vmatpush2.msra.mxu0 %v315
    %982 = vmatprep.mubr.f32.mxu0 %v96
    %983 = vmatmul.mubr.f32.gmra.mxu0 %v95
    %v984 = vpop.f32.mrf.mxu0
    %v985 = vadd.f32 %v915, %v984
    %v986 = vpop.f32.mrf.mxu0
    %987 = vdwg.mxu0
    %988 = vmatprep.subr.mxu0 0.0
    %989 = vmatpush1.msra.mxu0 %v346
    %990 = vmatprep.subr.mxu0 0.0
    %991 = vmatpush1.msra.mxu0 %v345
    %992 = vmatprep.subr.mxu0 0.0
    %993 = vmatpush1.msra.mxu0 %v344
    %994 = vmatprep.subr.mxu0 0.0
    %995 = vmatpush1.msra.mxu0 %v343
    %996 = vmatprep.subr.mxu0 0.0
    %997 = vmatpush1.msra.mxu0 %v342
    %998 = vmatprep.subr.mxu0 0.0
    %999 = vmatpush1.msra.mxu0 %v341
    %1000 = vmatprep.subr.mxu0 0.0
    %1001 = vmatpush1.msra.mxu0 %v340
    %1002 = vmatprep.subr.mxu0 0.0
    %1003 = vmatpush1.msra.mxu0 %v339
    %1004 = vmatprep.subr.mxu0 0.0
    %1005 = vmatpush1.msra.mxu0 %v338
    %1006 = vmatprep.subr.mxu0 0.0
    %1007 = vmatpush1.msra.mxu0 %v337
    %1008 = vmatprep.subr.mxu0 0.0
    %1009 = vmatpush1.msra.mxu0 %v336
    %1010 = vmatprep.subr.mxu0 0.0
    %1011 = vmatpush1.msra.mxu0 %v335
    %1012 = vmatprep.subr.mxu0 0.0
    %1013 = vmatpush1.msra.mxu0 %v334
    %1014 = vmatprep.subr.mxu0 0.0
    %1015 = vmatpush1.msra.mxu0 %v333
    %1016 = vmatprep.subr.mxu0 0.0
    %1017 = vmatpush1.msra.mxu0 %v332
    %1018 = vmatprep.subr.mxu0 0.0
    %1019 = vmatpush1.msra.mxu0 %v331
    %1020 = vmatprep.subr.mxu0 0.0
    %1021 = vmatpush2.msra.mxu0 %v362
    %1022 = vmatprep.subr.mxu0 0.0
    %1023 = vmatpush2.msra.mxu0 %v361
    %1024 = vmatprep.subr.mxu0 0.0
    %1025 = vmatpush2.msra.mxu0 %v360
    %1026 = vmatprep.subr.mxu0 0.0
    %1027 = vmatpush2.msra.mxu0 %v359
    %1028 = vmatprep.subr.mxu0 0.0
    %1029 = vmatpush2.msra.mxu0 %v358
    %1030 = vmatprep.subr.mxu0 0.0
    %1031 = vmatpush2.msra.mxu0 %v357
    %1032 = vmatprep.subr.mxu0 0.0
    %1033 = vmatpush2.msra.mxu0 %v356
    %1034 = vmatprep.subr.mxu0 0.0
    %1035 = vmatpush2.msra.mxu0 %v355
    %1036 = vmatprep.subr.mxu0 0.0
    %1037 = vmatpush2.msra.mxu0 %v354
    %1038 = vmatprep.subr.mxu0 0.0
    %1039 = vmatpush2.msra.mxu0 %v353
    %1040 = vmatprep.subr.mxu0 0.0
    %1041 = vmatpush2.msra.mxu0 %v352
    %1042 = vmatprep.subr.mxu0 0.0
    %1043 = vmatpush2.msra.mxu0 %v351
    %1044 = vmatprep.subr.mxu0 0.0
    %1045 = vmatpush2.msra.mxu0 %v350
    %1046 = vmatprep.subr.mxu0 0.0
    %1047 = vmatpush2.msra.mxu0 %v349
    %1048 = vmatprep.subr.mxu0 0.0
    %1049 = vmatpush2.msra.mxu0 %v348
    %1050 = vmatprep.subr.mxu0 0.0
    %1051 = vmatpush2.msra.mxu0 %v347
    %1052 = vmatprep.mubr.f32.mxu0 %v98
    %1053 = vmatmul.mubr.f32.gmra.mxu0 %v97
    %v1054 = vpop.f32.mrf.mxu0
    %v1055 = vadd.f32 %v985, %v1054
    %v1056 = vpop.f32.mrf.mxu0
    %1057 = vdwg.mxu0
    %1058 = vmatprep.subr.mxu0 0.0
    %1059 = vmatpush1.msra.mxu0 %v378
    %1060 = vmatprep.subr.mxu0 0.0
    %1061 = vmatpush1.msra.mxu0 %v377
    %1062 = vmatprep.subr.mxu0 0.0
    %1063 = vmatpush1.msra.mxu0 %v376
    %1064 = vmatprep.subr.mxu0 0.0
    %1065 = vmatpush1.msra.mxu0 %v375
    %1066 = vmatprep.subr.mxu0 0.0
    %1067 = vmatpush1.msra.mxu0 %v374
    %1068 = vmatprep.subr.mxu0 0.0
    %1069 = vmatpush1.msra.mxu0 %v373
    %1070 = vmatprep.subr.mxu0 0.0
    %1071 = vmatpush1.msra.mxu0 %v372
    %1072 = vmatprep.subr.mxu0 0.0
    %1073 = vmatpush1.msra.mxu0 %v371
    %1074 = vmatprep.subr.mxu0 0.0
    %1075 = vmatpush1.msra.mxu0 %v370
    %1076 = vmatprep.subr.mxu0 0.0
    %1077 = vmatpush1.msra.mxu0 %v369
    %1078 = vmatprep.subr.mxu0 0.0
    %1079 = vmatpush1.msra.mxu0 %v368
    %1080 = vmatprep.subr.mxu0 0.0
    %1081 = vmatpush1.msra.mxu0 %v367
    %1082 = vmatprep.subr.mxu0 0.0
    %1083 = vmatpush1.msra.mxu0 %v366
    %1084 = vmatprep.subr.mxu0 0.0
    %1085 = vmatpush1.msra.mxu0 %v365
    %1086 = vmatprep.subr.mxu0 0.0
    %1087 = vmatpush1.msra.mxu0 %v364
    %1088 = vmatprep.subr.mxu0 0.0
    %1089 = vmatpush1.msra.mxu0 %v363
    %1090 = vmatprep.subr.mxu0 0.0
    %1091 = vmatpush2.msra.mxu0 %v394
    %1092 = vmatprep.subr.mxu0 0.0
    %1093 = vmatpush2.msra.mxu0 %v393
    %1094 = vmatprep.subr.mxu0 0.0
    %1095 = vmatpush2.msra.mxu0 %v392
    %1096 = vmatprep.subr.mxu0 0.0
    %1097 = vmatpush2.msra.mxu0 %v391
    %1098 = vmatprep.subr.mxu0 0.0
    %1099 = vmatpush2.msra.mxu0 %v390
    %1100 = vmatprep.subr.mxu0 0.0
    %1101 = vmatpush2.msra.mxu0 %v389
    %1102 = vmatprep.subr.mxu0 0.0
    %1103 = vmatpush2.msra.mxu0 %v388
    %1104 = vmatprep.subr.mxu0 0.0
    %1105 = vmatpush2.msra.mxu0 %v387
    %1106 = vmatprep.subr.mxu0 0.0
    %1107 = vmatpush2.msra.mxu0 %v386
    %1108 = vmatprep.subr.mxu0 0.0
    %1109 = vmatpush2.msra.mxu0 %v385
    %1110 = vmatprep.subr.mxu0 0.0
    %1111 = vmatpush2.msra.mxu0 %v384
    %1112 = vmatprep.subr.mxu0 0.0
    %1113 = vmatpush2.msra.mxu0 %v383
    %1114 = vmatprep.subr.mxu0 0.0
    %1115 = vmatpush2.msra.mxu0 %v382
    %1116 = vmatprep.subr.mxu0 0.0
    %1117 = vmatpush2.msra.mxu0 %v381
    %1118 = vmatprep.subr.mxu0 0.0
    %1119 = vmatpush2.msra.mxu0 %v380
    %1120 = vmatprep.subr.mxu0 0.0
    %1121 = vmatpush2.msra.mxu0 %v379
    %1122 = vmatprep.mubr.f32.mxu0 %v100
    %1123 = vmatmul.mubr.f32.gmra.mxu0 %v99
    %v1124 = vpop.f32.mrf.mxu0
    %v1125 = vadd.f32 %v1055, %v1124
    %v1126 = vpop.f32.mrf.mxu0
    %1127 = vdwg.mxu0
    %1128 = vmatprep.subr.mxu0 0.0
    %1129 = vmatpush1.msra.mxu0 %v410
    %1130 = vmatprep.subr.mxu0 0.0
    %1131 = vmatpush1.msra.mxu0 %v409
    %1132 = vmatprep.subr.mxu0 0.0
    %1133 = vmatpush1.msra.mxu0 %v408
    %1134 = vmatprep.subr.mxu0 0.0
    %1135 = vmatpush1.msra.mxu0 %v407
    %1136 = vmatprep.subr.mxu0 0.0
    %1137 = vmatpush1.msra.mxu0 %v406
    %1138 = vmatprep.subr.mxu0 0.0
    %1139 = vmatpush1.msra.mxu0 %v405
    %1140 = vmatprep.subr.mxu0 0.0
    %1141 = vmatpush1.msra.mxu0 %v404
    %1142 = vmatprep.subr.mxu0 0.0
    %1143 = vmatpush1.msra.mxu0 %v403
    %1144 = vmatprep.subr.mxu0 0.0
    %1145 = vmatpush1.msra.mxu0 %v402
    %1146 = vmatprep.subr.mxu0 0.0
    %1147 = vmatpush1.msra.mxu0 %v401
    %1148 = vmatprep.subr.mxu0 0.0
    %1149 = vmatpush1.msra.mxu0 %v400
    %1150 = vmatprep.subr.mxu0 0.0
    %1151 = vmatpush1.msra.mxu0 %v399
    %1152 = vmatprep.subr.mxu0 0.0
    %1153 = vmatpush1.msra.mxu0 %v398
    %1154 = vmatprep.subr.mxu0 0.0
    %1155 = vmatpush1.msra.mxu0 %v397
    %1156 = vmatprep.subr.mxu0 0.0
    %1157 = vmatpush1.msra.mxu0 %v396
    %1158 = vmatprep.subr.mxu0 0.0
    %1159 = vmatpush1.msra.mxu0 %v395
    %1160 = vmatprep.subr.mxu0 0.0
    %1161 = vmatpush2.msra.mxu0 %v426
    %1162 = vmatprep.subr.mxu0 0.0
    %1163 = vmatpush2.msra.mxu0 %v425
    %1164 = vmatprep.subr.mxu0 0.0
    %1165 = vmatpush2.msra.mxu0 %v424
    %1166 = vmatprep.subr.mxu0 0.0
    %1167 = vmatpush2.msra.mxu0 %v423
    %1168 = vmatprep.subr.mxu0 0.0
    %1169 = vmatpush2.msra.mxu0 %v422
    %1170 = vmatprep.subr.mxu0 0.0
    %1171 = vmatpush2.msra.mxu0 %v421
    %1172 = vmatprep.subr.mxu0 0.0
    %1173 = vmatpush2.msra.mxu0 %v420
    %1174 = vmatprep.subr.mxu0 0.0
    %1175 = vmatpush2.msra.mxu0 %v419
    %1176 = vmatprep.subr.mxu0 0.0
    %1177 = vmatpush2.msra.mxu0 %v418
    %1178 = vmatprep.subr.mxu0 0.0
    %1179 = vmatpush2.msra.mxu0 %v417
    %1180 = vmatprep.subr.mxu0 0.0
    %1181 = vmatpush2.msra.mxu0 %v416
    %1182 = vmatprep.subr.mxu0 0.0
    %1183 = vmatpush2.msra.mxu0 %v415
    %1184 = vmatprep.subr.mxu0 0.0
    %1185 = vmatpush2.msra.mxu0 %v414
    %1186 = vmatprep.subr.mxu0 0.0
    %1187 = vmatpush2.msra.mxu0 %v413
    %1188 = vmatprep.subr.mxu0 0.0
    %1189 = vmatpush2.msra.mxu0 %v412
    %1190 = vmatprep.subr.mxu0 0.0
    %1191 = vmatpush2.msra.mxu0 %v411
    %1192 = vmatprep.mubr.f32.mxu0 %v102
    %1193 = vmatmul.mubr.f32.gmra.mxu0 %v101
    %v1194 = vpop.f32.mrf.mxu0
    %v1195 = vadd.f32 %v1125, %v1194
    %v1196 = vpop.f32.mrf.mxu0
    %1197 = vdwg.mxu0
    %1198 = vmatprep.subr.mxu0 0.0
    %1199 = vmatpush1.msra.mxu0 %v442
    %1200 = vmatprep.subr.mxu0 0.0
    %1201 = vmatpush1.msra.mxu0 %v441
    %1202 = vmatprep.subr.mxu0 0.0
    %1203 = vmatpush1.msra.mxu0 %v440
    %1204 = vmatprep.subr.mxu0 0.0
    %1205 = vmatpush1.msra.mxu0 %v439
    %1206 = vmatprep.subr.mxu0 0.0
    %1207 = vmatpush1.msra.mxu0 %v438
    %1208 = vmatprep.subr.mxu0 0.0
    %1209 = vmatpush1.msra.mxu0 %v437
    %1210 = vmatprep.subr.mxu0 0.0
    %1211 = vmatpush1.msra.mxu0 %v436
    %1212 = vmatprep.subr.mxu0 0.0
    %1213 = vmatpush1.msra.mxu0 %v435
    %1214 = vmatprep.subr.mxu0 0.0
    %1215 = vmatpush1.msra.mxu0 %v434
    %1216 = vmatprep.subr.mxu0 0.0
    %1217 = vmatpush1.msra.mxu0 %v433
    %1218 = vmatprep.subr.mxu0 0.0
    %1219 = vmatpush1.msra.mxu0 %v432
    %1220 = vmatprep.subr.mxu0 0.0
    %1221 = vmatpush1.msra.mxu0 %v431
    %1222 = vmatprep.subr.mxu0 0.0
    %1223 = vmatpush1.msra.mxu0 %v430
    %1224 = vmatprep.subr.mxu0 0.0
    %1225 = vmatpush1.msra.mxu0 %v429
    %1226 = vmatprep.subr.mxu0 0.0
    %1227 = vmatpush1.msra.mxu0 %v428
    %1228 = vmatprep.subr.mxu0 0.0
    %1229 = vmatpush1.msra.mxu0 %v427
    %1230 = vmatprep.subr.mxu0 0.0
    %1231 = vmatpush2.msra.mxu0 %v458
    %1232 = vmatprep.subr.mxu0 0.0
    %1233 = vmatpush2.msra.mxu0 %v457
    %1234 = vmatprep.subr.mxu0 0.0
    %1235 = vmatpush2.msra.mxu0 %v456
    %1236 = vmatprep.subr.mxu0 0.0
    %1237 = vmatpush2.msra.mxu0 %v455
    %1238 = vmatprep.subr.mxu0 0.0
    %1239 = vmatpush2.msra.mxu0 %v454
    %1240 = vmatprep.subr.mxu0 0.0
    %1241 = vmatpush2.msra.mxu0 %v453
    %1242 = vmatprep.subr.mxu0 0.0
    %1243 = vmatpush2.msra.mxu0 %v452
    %1244 = vmatprep.subr.mxu0 0.0
    %1245 = vmatpush2.msra.mxu0 %v451
    %1246 = vmatprep.subr.mxu0 0.0
    %1247 = vmatpush2.msra.mxu0 %v450
    %1248 = vmatprep.subr.mxu0 0.0
    %1249 = vmatpush2.msra.mxu0 %v449
    %1250 = vmatprep.subr.mxu0 0.0
    %1251 = vmatpush2.msra.mxu0 %v448
    %1252 = vmatprep.subr.mxu0 0.0
    %1253 = vmatpush2.msra.mxu0 %v447
    %1254 = vmatprep.subr.mxu0 0.0
    %1255 = vmatpush2.msra.mxu0 %v446
    %1256 = vmatprep.subr.mxu0 0.0
    %1257 = vmatpush2.msra.mxu0 %v445
    %1258 = vmatprep.subr.mxu0 0.0
    %1259 = vmatpush2.msra.mxu0 %v444
    %1260 = vmatprep.subr.mxu0 0.0
    %1261 = vmatpush2.msra.mxu0 %v443
    %1262 = vmatprep.mubr.f32.mxu0 %v104
    %1263 = vmatmul.mubr.f32.gmra.mxu0 %v103
    %v1264 = vpop.f32.mrf.mxu0
    %v1265 = vadd.f32 %v1195, %v1264
    %v1266 = vpop.f32.mrf.mxu0
    %1267 = vdwg.mxu0
    %1268 = vmatprep.subr.mxu0 0.0
    %1269 = vmatpush1.msra.mxu0 %v474
    %1270 = vmatprep.subr.mxu0 0.0
    %1271 = vmatpush1.msra.mxu0 %v473
    %1272 = vmatprep.subr.mxu0 0.0
    %1273 = vmatpush1.msra.mxu0 %v472
    %1274 = vmatprep.subr.mxu0 0.0
    %1275 = vmatpush1.msra.mxu0 %v471
    %1276 = vmatprep.subr.mxu0 0.0
    %1277 = vmatpush1.msra.mxu0 %v470
    %1278 = vmatprep.subr.mxu0 0.0
    %1279 = vmatpush1.msra.mxu0 %v469
    %1280 = vmatprep.subr.mxu0 0.0
    %1281 = vmatpush1.msra.mxu0 %v468
    %1282 = vmatprep.subr.mxu0 0.0
    %1283 = vmatpush1.msra.mxu0 %v467
    %1284 = vmatprep.subr.mxu0 0.0
    %1285 = vmatpush1.msra.mxu0 %v466
    %1286 = vmatprep.subr.mxu0 0.0
    %1287 = vmatpush1.msra.mxu0 %v465
    %1288 = vmatprep.subr.mxu0 0.0
    %1289 = vmatpush1.msra.mxu0 %v464
    %1290 = vmatprep.subr.mxu0 0.0
    %1291 = vmatpush1.msra.mxu0 %v463
    %1292 = vmatprep.subr.mxu0 0.0
    %1293 = vmatpush1.msra.mxu0 %v462
    %1294 = vmatprep.subr.mxu0 0.0
    %1295 = vmatpush1.msra.mxu0 %v461
    %1296 = vmatprep.subr.mxu0 0.0
    %1297 = vmatpush1.msra.mxu0 %v460
    %1298 = vmatprep.subr.mxu0 0.0
    %1299 = vmatpush1.msra.mxu0 %v459
    %1300 = vmatprep.subr.mxu0 0.0
    %1301 = vmatpush2.msra.mxu0 %v490
    %1302 = vmatprep.subr.mxu0 0.0
    %1303 = vmatpush2.msra.mxu0 %v489
    %1304 = vmatprep.subr.mxu0 0.0
    %1305 = vmatpush2.msra.mxu0 %v488
    %1306 = vmatprep.subr.mxu0 0.0
    %1307 = vmatpush2.msra.mxu0 %v487
    %1308 = vmatprep.subr.mxu0 0.0
    %1309 = vmatpush2.msra.mxu0 %v486
    %1310 = vmatprep.subr.mxu0 0.0
    %1311 = vmatpush2.msra.mxu0 %v485
    %1312 = vmatprep.subr.mxu0 0.0
    %1313 = vmatpush2.msra.mxu0 %v484
    %1314 = vmatprep.subr.mxu0 0.0
    %1315 = vmatpush2.msra.mxu0 %v483
    %1316 = vmatprep.subr.mxu0 0.0
    %1317 = vmatpush2.msra.mxu0 %v482
    %1318 = vmatprep.subr.mxu0 0.0
    %1319 = vmatpush2.msra.mxu0 %v481
    %1320 = vmatprep.subr.mxu0 0.0
    %1321 = vmatpush2.msra.mxu0 %v480
    %1322 = vmatprep.subr.mxu0 0.0
    %1323 = vmatpush2.msra.mxu0 %v479
    %1324 = vmatprep.subr.mxu0 0.0
    %1325 = vmatpush2.msra.mxu0 %v478
    %1326 = vmatprep.subr.mxu0 0.0
    %1327 = vmatpush2.msra.mxu0 %v477
    %1328 = vmatprep.subr.mxu0 0.0
    %1329 = vmatpush2.msra.mxu0 %v476
    %1330 = vmatprep.subr.mxu0 0.0
    %1331 = vmatpush2.msra.mxu0 %v475
    %1332 = vmatprep.mubr.f32.mxu0 %v106
    %1333 = vmatmul.mubr.f32.gmra.mxu0 %v105
    %v1334 = vpop.f32.mrf.mxu0
    %v1335 = vadd.f32 %v1265, %v1334
    %v1336 = vpop.f32.mrf.mxu0
    %1337 = vdwg.mxu0
    %v1338 = vmax.f32 %v1335, 0.0
    %v1339 = vld [vmem:[#allocation8] sm:$0xff]
    %v1340 = vld [vmem:[#allocation8 + $0x8] sm:$0xff]
    %v1341 = vld [vmem:[#allocation8 + $0x10] sm:$0xff]
    %v1342 = vld [vmem:[#allocation8 + $0x18] sm:$0xff]
    %v1343 = vld [vmem:[#allocation8 + $0x20] sm:$0xff]
    %v1344 = vld [vmem:[#allocation8 + $0x28] sm:$0xff]
    %v1345 = vld [vmem:[#allocation8 + $0x30] sm:$0xff]
    %v1346 = vld [vmem:[#allocation8 + $0x38] sm:$0xff]
    %v1347 = vld [vmem:[#allocation8 + $0x40] sm:$0xff]
    %v1348 = vld [vmem:[#allocation8 + $0x48] sm:$0xff]
    %v1349 = vld [vmem:[#allocation8 + $0x50] sm:$0xff]
    %v1350 = vld [vmem:[#allocation8 + $0x58] sm:$0xff]
    %v1351 = vld [vmem:[#allocation8 + $0x60] sm:$0xff]
    %v1352 = vld [vmem:[#allocation8 + $0x68] sm:$0xff]
    %v1353 = vld [vmem:[#allocation8 + $0x70] sm:$0xff]
    %v1354 = vld [vmem:[#allocation8 + $0x78] sm:$0xff]
    %v1355 = vld [vmem:[#allocation10] sm:$0x1]
    %v1357 = vlaneseq
    %v1358 = vshrl.u32 %v1357, 7
    %v1359 = vsub.s32 0, %v1358
    %v1360 = vrot.slane %v1355, %v1359
    %1362 = vmatprep.subr.mxu0 0.0
    %1363 = vmatpush1.msra.mxu0 %v1354
    %1364 = vmatprep.subr.mxu0 0.0
    %1365 = vmatpush1.msra.mxu0 %v1353
    %1366 = vmatprep.subr.mxu0 0.0
    %1367 = vmatpush1.msra.mxu0 %v1352
    %1368 = vmatprep.subr.mxu0 0.0
    %1369 = vmatpush1.msra.mxu0 %v1351
    %1370 = vmatprep.subr.mxu0 0.0
    %1371 = vmatpush1.msra.mxu0 %v1350
    %1372 = vmatprep.subr.mxu0 0.0
    %1373 = vmatpush1.msra.mxu0 %v1349
    %1374 = vmatprep.subr.mxu0 0.0
    %1375 = vmatpush1.msra.mxu0 %v1348
    %1376 = vmatprep.subr.mxu0 0.0
    %1377 = vmatpush1.msra.mxu0 %v1347
    %1378 = vmatprep.subr.mxu0 0.0
    %1379 = vmatpush1.msra.mxu0 %v1346
    %1380 = vmatprep.subr.mxu0 0.0
    %1381 = vmatpush1.msra.mxu0 %v1345
    %1382 = vmatprep.subr.mxu0 0.0
    %1383 = vmatpush1.msra.mxu0 %v1344
    %1384 = vmatprep.subr.mxu0 0.0
    %1385 = vmatpush1.msra.mxu0 %v1343
    %1386 = vmatprep.subr.mxu0 0.0
    %1387 = vmatpush1.msra.mxu0 %v1342
    %1388 = vmatprep.subr.mxu0 0.0
    %1389 = vmatpush1.msra.mxu0 %v1341
    %1390 = vmatprep.subr.mxu0 0.0
    %1391 = vmatpush1.msra.mxu0 %v1340
    %1392 = vmatprep.subr.mxu0 0.0
    %1393 = vmatpush1.msra.mxu0 %v1339
    %1394 = vmatprep.subr.mxu0 0.0
    %1395 = vmatpush2.msra.mxu0 0.0
    %1396 = vmatprep.subr.mxu0 0.0
    %1397 = vmatpush2.msra.mxu0 0.0
    %1398 = vmatprep.subr.mxu0 0.0
    %1399 = vmatpush2.msra.mxu0 0.0
    %1400 = vmatprep.subr.mxu0 0.0
    %1401 = vmatpush2.msra.mxu0 0.0
    %1402 = vmatprep.subr.mxu0 0.0
    %1403 = vmatpush2.msra.mxu0 0.0
    %1404 = vmatprep.subr.mxu0 0.0
    %1405 = vmatpush2.msra.mxu0 0.0
    %1406 = vmatprep.subr.mxu0 0.0
    %1407 = vmatpush2.msra.mxu0 0.0
    %1408 = vmatprep.subr.mxu0 0.0
    %1409 = vmatpush2.msra.mxu0 0.0
    %1410 = vmatprep.subr.mxu0 0.0
    %1411 = vmatpush2.msra.mxu0 0.0
    %1412 = vmatprep.subr.mxu0 0.0
    %1413 = vmatpush2.msra.mxu0 0.0
    %1414 = vmatprep.subr.mxu0 0.0
    %1415 = vmatpush2.msra.mxu0 0.0
    %1416 = vmatprep.subr.mxu0 0.0
    %1417 = vmatpush2.msra.mxu0 0.0
    %1418 = vmatprep.subr.mxu0 0.0
    %1419 = vmatpush2.msra.mxu0 0.0
    %1420 = vmatprep.subr.mxu0 0.0
    %1421 = vmatpush2.msra.mxu0 0.0
    %1422 = vmatprep.subr.mxu0 0.0
    %1423 = vmatpush2.msra.mxu0 0.0
    %1424 = vmatprep.subr.mxu0 0.0
    %1425 = vmatpush2.msra.mxu0 0.0
    %1426 = vmatprep.mubr.f32.mxu0 0.0
    %1427 = vmatmul.mubr.f32.gmra.mxu0 %v1338
    %v1428 = vpop.f32.mrf.mxu0
    %v1429 = vadd.f32 %v1360, %v1428
    %v1430 = vpop.f32.mrf.mxu0
    %1431 = vdwg.mxu0
    %1432 = vst [vmem:[#allocation11] sm:$0xff] %v1429
    // Predicated region
    $region42: #{tpu_custom_call.1} parent=1 // pred_check
      _
    $region43: #{tpu_custom_call.1} parent=1 // pred_check_branch
      %1434 = sbr.rel (0) target = $region45
    $region44: #{tpu_custom_call.1} parent=1 // pred_region
      %s1436 = ssub.s32 128, 128
      %1437 = vsyncadd [#allocation4], %s1436
      %s1439 = sshll.u32 [#allocation11], 4
      %s1440 = int_to_ptr.vmem [resolvable:$true] %s1439
      %1442 = dma.vmem_to_hbm [thread:$0]  %s1440, 128, %s5, [#allocation4]
    $region45: #{tpu_custom_call.1} parent=1 // pred_fallthru
      _
    // Predicated region
    $region46: #{tpu_custom_call.1} parent=1 // pred_check
      _
    $region47: #{tpu_custom_call.1} parent=1 // pred_check_branch
      %1444 = sbr.rel (0) target = $region49
    $region48: #{tpu_custom_call.1} parent=1 // pred_region
      %1445 = dma.done [#allocation4], 128
    $region49: #{tpu_custom_call.1} parent=1 // pred_fallthru
      _
    %1446 = vsyncpa [#allocation3], 1
    %1447 = vsyncpa [#allocation6], 1
    %1448 = vsyncpa [#allocation9], 1
    %1449 = vsyncpa [#allocation4], 1

</llo_original>
